<compile_context>
chip_gen: v6e
topology: v6e:2x2x1
jax: 0.10.0
libtpu: 0.0.40
codegen_flags: <defaults>
</compile_context>

<pallas_src>
import jax
import jax.numpy as jnp
from jax import lax
from jax.experimental import pallas as pl
from jax.experimental.pallas import tpu as pltpu

LANE = 128  # TPU lane width; feature dims are padded to a multiple of this.


def _flash_attention_kernel(xq_ref, xkv_ref, wq_ref, wk_ref, wv_ref,
                            wout_ref, bout_ref, o_ref,
                            q_sc, m_sc, l_sc, acc_sc):
    """One grid step = (batch b, q-tile qi, k-tile ki). ki is the reduction axis."""
    ki = pl.program_id(2)

    @pl.when(ki == 0)
    def _init():
        # q projection for this q-tile, computed once and cached in VMEM scratch.
        xq = xq_ref[0]                                              # (TQ, Din)  bf16
        q = jnp.dot(xq, wq_ref[...], preferred_element_type=jnp.float32)
        q_sc[...] = q.astype(jnp.bfloat16)
        m_sc[...] = jnp.full_like(m_sc, -jnp.inf)
        l_sc[...] = jnp.zeros_like(l_sc)
        acc_sc[...] = jnp.zeros_like(acc_sc)

    # k / v projections for this key tile (bf16 MXU operands, f32 accumulate).
    xkv = xkv_ref[0]                                                # (TK, Din)  bf16
    k = jnp.dot(xkv, wk_ref[...],
                preferred_element_type=jnp.float32).astype(jnp.bfloat16)
    v = jnp.dot(xkv, wv_ref[...],
                preferred_element_type=jnp.float32).astype(jnp.bfloat16)

    # scores = q . k^T via dot_general contracting the last dim of BOTH operands
    # (no explicit transpose / relayout).  scale is already folded into w_q.
    s = lax.dot_general(q_sc[...], k, (((1,), (1,)), ((), ())),
                        preferred_element_type=jnp.float32)         # (TQ, TK) f32

    # Online softmax update (all elementwise math in f32).
    m_prev = m_sc[...]                                              # (TQ, 1)
    m_new = jnp.maximum(m_prev, jnp.max(s, axis=-1, keepdims=True))
    alpha = jnp.exp(m_prev - m_new)                                 # = 0 on first step
    p = jnp.exp(s - m_new)                                          # (TQ, TK) f32
    l_sc[...] = alpha * l_sc[...] + jnp.sum(p, axis=-1, keepdims=True)
    acc_sc[...] = alpha * acc_sc[...] + jnp.dot(
        p.astype(jnp.bfloat16), v, preferred_element_type=jnp.float32)
    m_sc[...] = m_new

    @pl.when(ki == pl.num_programs(2) - 1)
    def _finalize():
        # Deferred softmax normalization (EUP approx reciprocal) + output projection.
        out = acc_sc[...] * pl.reciprocal(l_sc[...], approx=True)   # (TQ, Dinner) f32
        y = jnp.dot(out.astype(jnp.bfloat16), wout_ref[...],
                    preferred_element_type=jnp.float32) + bout_ref[...]
        o_ref[0] = y.astype(o_ref.dtype)


def _pad_axis(a, axis, multiple):
    pad = (-a.shape[axis]) % multiple
    if pad == 0:
        return a
    widths = [(0, 0)] * a.ndim
    widths[axis] = (0, pad)
    return jnp.pad(a, widths)


def attention_pallas(x, w_qkv, w_out, b_out, *, dim_inner: int, scale: float,
                     tq: int = 128, tk: int = 128):
    """x: (B, N, dim_in); w_qkv: (dim_in, 3*dim_inner); w_out: (dim_inner, dim_out);
    b_out: (1, dim_out). Returns (B, N, dim_out)."""
    B, N, dim_in = x.shape
    dim_out = w_out.shape[1]

    tq = min(tq, N)
    tk = min(tk, N)
    assert N % tq == 0 and N % tk == 0, "sequence length must be a multiple of the tile size"
    assert (tq == N or tq % 8 == 0) and (tk == N or tk % 8 == 0)

    # Split fused qkv weight (keeps every kernel operand lane-dense, no lane-axis slices)
    # and fold the attention scale into the q projection weight (free at runtime).
    w_q = w_qkv[:, 0 * dim_inner:1 * dim_inner] * scale
    w_k = w_qkv[:, 1 * dim_inner:2 * dim_inner]
    w_v = w_qkv[:, 2 * dim_inner:3 * dim_inner]

    # Zero-pad feature dims to lane width so matmuls / stores use full (…,128) tiles.
    # Padding is mathematically inert (padded rows/cols are zero, padded outputs sliced off).
    x_p = _pad_axis(x, 2, LANE).astype(jnp.bfloat16)
    w_q_p = _pad_axis(_pad_axis(w_q, 0, LANE), 1, LANE).astype(jnp.bfloat16)
    w_k_p = _pad_axis(_pad_axis(w_k, 0, LANE), 1, LANE).astype(jnp.bfloat16)
    w_v_p = _pad_axis(_pad_axis(w_v, 0, LANE), 1, LANE).astype(jnp.bfloat16)
    w_out_p = _pad_axis(_pad_axis(w_out, 0, LANE), 1, LANE).astype(jnp.bfloat16)
    b_out_p = _pad_axis(b_out, 1, LANE).astype(jnp.float32)

    din_p = x_p.shape[2]
    dk_p = w_q_p.shape[1]
    do_p = w_out_p.shape[1]

    grid = (B, N // tq, N // tk)

    out_p = pl.pallas_call(
        _flash_attention_kernel,
        out_shape=jax.ShapeDtypeStruct((B, N, do_p), x.dtype),
        grid_spec=pltpu.PrefetchScalarGridSpec(
            num_scalar_prefetch=0,
            grid=grid,
            in_specs=[
                # x for the q tile (rows qi) and for the k/v tile (rows ki).
                pl.BlockSpec((1, tq, din_p), lambda b, qi, ki: (b, qi, 0)),
                pl.BlockSpec((1, tk, din_p), lambda b, qi, ki: (b, ki, 0)),
                # Weights / bias: constant block index -> fetched once and held resident.
                pl.BlockSpec((din_p, dk_p), lambda b, qi, ki: (0, 0)),
                pl.BlockSpec((din_p, dk_p), lambda b, qi, ki: (0, 0)),
                pl.BlockSpec((din_p, dk_p), lambda b, qi, ki: (0, 0)),
                pl.BlockSpec((dk_p, do_p), lambda b, qi, ki: (0, 0)),
                pl.BlockSpec((1, do_p), lambda b, qi, ki: (0, 0)),
            ],
            out_specs=pl.BlockSpec((1, tq, do_p), lambda b, qi, ki: (b, qi, 0)),
            scratch_shapes=[
                pltpu.VMEM((tq, dk_p), jnp.bfloat16),   # cached q tile
                pltpu.VMEM((tq, 1), jnp.float32),       # running max  m
                pltpu.VMEM((tq, 1), jnp.float32),       # running sum  l
                pltpu.VMEM((tq, dk_p), jnp.float32),    # output accumulator
            ],
        ),
        compiler_params=pltpu.CompilerParams(
            dimension_semantics=("parallel", "parallel", "arbitrary"),
            vmem_limit_bytes=48 * 1024 * 1024,          # fits v7x's 64 MiB physical VMEM
        ),
    )(x_p, x_p, w_q_p, w_k_p, w_v_p, w_out_p, b_out_p)

    return out_p[:, :, :dim_out]


def attention_ref(x, w_qkv, w_out, b_out, *, dim_inner: int, scale: float):
    """Pure-JAX f32 reference matching the PyTorch forward."""
    qkv = jnp.einsum('bnd,df->bnf', x, w_qkv)
    q, k, v = jnp.split(qkv, 3, axis=-1)
    sim = jnp.einsum('bid,bjd->bij', q, k) * scale
    attn = jax.nn.softmax(sim, axis=-1)
    out = jnp.einsum('bij,bjd->bid', attn, v)
    return jnp.einsum('bid,do->bio', out, w_out) + b_out[None, :, :]


if __name__ == "__main__":
    # Module hyperparameters (small, synthetic; N chosen to exercise the q/k tiling).
    B, N = 2, 256
    dim_in, dim_inner, dim_out = 32, 32, 32
    scale = dim_inner ** (-0.5)

    key = jax.random.PRNGKey(0)
    kx, kq, kw, kb = jax.random.split(key, 4)

    x = jax.random.normal(kx, (B, N, dim_in), dtype=jnp.float32)
    # PyTorch stores Linear weight as (out, in); we keep the math x @ W^T by sampling
    # directly in (in, out) layout.
    w_qkv = jax.random.normal(kq, (dim_in, 3 * dim_inner), dtype=jnp.float32) * 0.05
    w_out = jax.random.normal(kw, (dim_inner, dim_out), dtype=jnp.float32) * 0.05
    b_out = jax.random.normal(kb, (1, dim_out), dtype=jnp.float32) * 0.05

    y = attention_pallas(x, w_qkv, w_out, b_out, dim_inner=dim_inner, scale=scale)
    y = jax.block_until_ready(y)

    y_ref = attention_ref(x, w_qkv, w_out, b_out, dim_inner=dim_inner, scale=scale)
    assert y.shape == (B, N, dim_out)
    max_err = float(jnp.max(jnp.abs(y - y_ref)))
    # bf16 MXU operands + approx reciprocal loosen the tolerance vs the f32 reference.
    assert jnp.allclose(y, y_ref, atol=2e-2, rtol=2e-2), f"mismatch vs reference (max err {max_err})"

    print("KERNEL_OK")
</pallas_src>

<mosaic_0001>
module attributes {stable_mosaic.version = 11 : i64} {
  func.func @_flash_attention_kernel(%arg0: i32, %arg1: i32, %arg2: i32, %arg3: memref<1x128x128xbf16, #tpu.memory_space<vmem>>, %arg4: memref<1x128x128xbf16, #tpu.memory_space<vmem>>, %arg5: memref<128x128xbf16, #tpu.memory_space<vmem>>, %arg6: memref<128x128xbf16, #tpu.memory_space<vmem>>, %arg7: memref<128x128xbf16, #tpu.memory_space<vmem>>, %arg8: memref<128x128xbf16, #tpu.memory_space<vmem>>, %arg9: memref<1x128xf32, #tpu.memory_space<vmem>>, %arg10: memref<1x128x128xf32, #tpu.memory_space<vmem>>, %arg11: memref<128x128xbf16, #tpu.memory_space<vmem>>, %arg12: memref<128x1xf32, #tpu.memory_space<vmem>>, %arg13: memref<128x1xf32, #tpu.memory_space<vmem>>, %arg14: memref<128x128xf32, #tpu.memory_space<vmem>>) attributes {dimension_semantics = [#tpu.dimension_semantics<parallel>, #tpu.dimension_semantics<parallel>, #tpu.dimension_semantics<arbitrary>], iteration_bounds = array<i64: 2, 2, 2>, scalar_prefetch = 0 : i64, scratch_operands = 4 : i64, tpu.core_type = #tpu.core_type<tc>, window_params = [{transform_indices = @transform_0, window_bounds = array<i64: 1, 128, 128>}, {transform_indices = @transform_1, window_bounds = array<i64: 1, 128, 128>}, {pipeline_mode = #tpu.pipeline_mode<synchronous>, transform_indices = @transform_2, window_bounds = array<i64: 128, 128>}, {pipeline_mode = #tpu.pipeline_mode<synchronous>, transform_indices = @transform_3, window_bounds = array<i64: 128, 128>}, {pipeline_mode = #tpu.pipeline_mode<synchronous>, transform_indices = @transform_4, window_bounds = array<i64: 128, 128>}, {pipeline_mode = #tpu.pipeline_mode<synchronous>, transform_indices = @transform_5, window_bounds = array<i64: 128, 128>}, {pipeline_mode = #tpu.pipeline_mode<synchronous>, transform_indices = @transform_6, window_bounds = array<i64: 1, 128>}, {transform_indices = @transform_7, window_bounds = array<i64: 1, 128, 128>}]} {
    %c0_i32 = arith.constant 0 : i32
    %0 = arith.cmpi eq, %arg2, %c0_i32 : i32
    %1 = arith.extui %0 : i1 to i32
    %c0_i32_0 = arith.constant 0 : i32
    %2 = arith.cmpi ne, %1, %c0_i32_0 : i32
    scf.if %2 {
      %c0_27 = arith.constant 0 : index
      %c0_28 = arith.constant 0 : index
      %c0_29 = arith.constant 0 : index
      %39 = vector.load %arg3[%c0_27, %c0_28, %c0_29] : memref<1x128x128xbf16, #tpu.memory_space<vmem>>, vector<1x128x128xbf16>
      %40 = vector.shape_cast %39 : vector<1x128x128xbf16> to vector<128x128xbf16>
      %c0_30 = arith.constant 0 : index
      %c0_31 = arith.constant 0 : index
      %41 = vector.load %arg5[%c0_30, %c0_31] : memref<128x128xbf16, #tpu.memory_space<vmem>>, vector<128x128xbf16>
      %cst_32 = arith.constant dense<0.000000e+00> : vector<128x128xf32>
      %42 = tpu.matmul %40, %41, %cst_32 {dimension_numbers = #tpu.dot_dimension_numbers<[1], [0], [0], [1], [0, 0, 1, 1], [], []>} : vector<128x128xbf16>, vector<128x128xbf16>, vector<128x128xf32> -> vector<128x128xf32>
      %43 = arith.truncf %42 : vector<128x128xf32> to vector<128x128xbf16>
      %c0_33 = arith.constant 0 : index
      %c0_34 = arith.constant 0 : index
      %44 = vector.load %arg11[%c0_33, %c0_34] : memref<128x128xbf16, #tpu.memory_space<vmem>>, vector<128x128xbf16>
      tpu.vector_store %arg11[%c0_33, %c0_34], %43 {strides = array<i32>} : memref<128x128xbf16, #tpu.memory_space<vmem>>, vector<128x128xbf16>,
      %cst_35 = arith.constant 0xFF800000 : f32
      %45 = vector.broadcast %cst_35 : f32 to vector<128x1xf32>
      %c0_36 = arith.constant 0 : index
      %c0_37 = arith.constant 0 : index
      %46 = vector.load %arg12[%c0_36, %c0_37] : memref<128x1xf32, #tpu.memory_space<vmem>>, vector<128x1xf32>
      tpu.vector_store %arg12[%c0_36, %c0_37], %45 {strides = array<i32>} : memref<128x1xf32, #tpu.memory_space<vmem>>, vector<128x1xf32>,
      %cst_38 = arith.constant 0.000000e+00 : f32
      %47 = vector.broadcast %cst_38 : f32 to vector<128x1xf32>
      %c0_39 = arith.constant 0 : index
      %c0_40 = arith.constant 0 : index
      %48 = vector.load %arg13[%c0_39, %c0_40] : memref<128x1xf32, #tpu.memory_space<vmem>>, vector<128x1xf32>
      tpu.vector_store %arg13[%c0_39, %c0_40], %47 {strides = array<i32>} : memref<128x1xf32, #tpu.memory_space<vmem>>, vector<128x1xf32>,
      %cst_41 = arith.constant 0.000000e+00 : f32
      %49 = vector.broadcast %cst_41 : f32 to vector<128x128xf32>
      %c0_42 = arith.constant 0 : index
      %c0_43 = arith.constant 0 : index
      %50 = vector.load %arg14[%c0_42, %c0_43] : memref<128x128xf32, #tpu.memory_space<vmem>>, vector<128x128xf32>
      tpu.vector_store %arg14[%c0_42, %c0_43], %49 {strides = array<i32>} : memref<128x128xf32, #tpu.memory_space<vmem>>, vector<128x128xf32>,
    } else {
    }
    %c0 = arith.constant 0 : index
    %c0_1 = arith.constant 0 : index
    %c0_2 = arith.constant 0 : index
    %3 = vector.load %arg4[%c0, %c0_1, %c0_2] : memref<1x128x128xbf16, #tpu.memory_space<vmem>>, vector<1x128x128xbf16>
    %4 = vector.shape_cast %3 : vector<1x128x128xbf16> to vector<128x128xbf16>
    %c0_3 = arith.constant 0 : index
    %c0_4 = arith.constant 0 : index
    %5 = vector.load %arg6[%c0_3, %c0_4] : memref<128x128xbf16, #tpu.memory_space<vmem>>, vector<128x128xbf16>
    %cst = arith.constant dense<0.000000e+00> : vector<128x128xf32>
    %6 = tpu.matmul %4, %5, %cst {dimension_numbers = #tpu.dot_dimension_numbers<[1], [0], [0], [1], [0, 0, 1, 1], [], []>} : vector<128x128xbf16>, vector<128x128xbf16>, vector<128x128xf32> -> vector<128x128xf32>
    %7 = arith.truncf %6 : vector<128x128xf32> to vector<128x128xbf16>
    %c0_5 = arith.constant 0 : index
    %c0_6 = arith.constant 0 : index
    %8 = vector.load %arg7[%c0_5, %c0_6] : memref<128x128xbf16, #tpu.memory_space<vmem>>, vector<128x128xbf16>
    %cst_7 = arith.constant dense<0.000000e+00> : vector<128x128xf32>
    %9 = tpu.matmul %4, %8, %cst_7 {dimension_numbers = #tpu.dot_dimension_numbers<[1], [0], [0], [1], [0, 0, 1, 1], [], []>} : vector<128x128xbf16>, vector<128x128xbf16>, vector<128x128xf32> -> vector<128x128xf32>
    %10 = arith.truncf %9 : vector<128x128xf32> to vector<128x128xbf16>
    %c0_8 = arith.constant 0 : index
    %c0_9 = arith.constant 0 : index
    %11 = vector.load %arg11[%c0_8, %c0_9] : memref<128x128xbf16, #tpu.memory_space<vmem>>, vector<128x128xbf16>
    %cst_10 = arith.constant dense<0.000000e+00> : vector<128x128xf32>
    %12 = tpu.matmul %11, %7, %cst_10 {dimension_numbers = #tpu.dot_dimension_numbers<[1], [1], [0], [0], [0, 0, 1, 0], [], []>} : vector<128x128xbf16>, vector<128x128xbf16>, vector<128x128xf32> -> vector<128x128xf32>
    %c0_11 = arith.constant 0 : index
    %c0_12 = arith.constant 0 : index
    %13 = vector.load %arg12[%c0_11, %c0_12] : memref<128x1xf32, #tpu.memory_space<vmem>>, vector<128x1xf32>
    %cst_13 = arith.constant dense<0xFF800000> : vector<128xf32>
    %14 = vector.multi_reduction <maximumf>, %12, %cst_13 [1] : vector<128x128xf32> to vector<128xf32>
    %15 = vector.shape_cast %14 : vector<128xf32> to vector<128x1xf32>
    %16 = arith.maximumf %13, %15 : vector<128x1xf32>
    %17 = arith.subf %13, %16 : vector<128x1xf32>
    %18 = math.exp %17 : vector<128x1xf32>
    %19 = vector.broadcast %16 : vector<128x1xf32> to vector<128x128xf32>
    %20 = arith.subf %12, %19 : vector<128x128xf32>
    %21 = math.exp %20 : vector<128x128xf32>
    %c0_14 = arith.constant 0 : index
    %c0_15 = arith.constant 0 : index
    %22 = vector.load %arg13[%c0_14, %c0_15] : memref<128x1xf32, #tpu.memory_space<vmem>>, vector<128x1xf32>
    %23 = arith.mulf %18, %22 : vector<128x1xf32>
    %cst_16 = arith.constant dense<0.000000e+00> : vector<128xf32>
    %24 = vector.multi_reduction <add>, %21, %cst_16 [1] : vector<128x128xf32> to vector<128xf32>
    %25 = vector.shape_cast %24 : vector<128xf32> to vector<128x1xf32>
    %26 = arith.addf %23, %25 : vector<128x1xf32>
    %c0_17 = arith.constant 0 : index
    %c0_18 = arith.constant 0 : index
    %27 = vector.load %arg13[%c0_17, %c0_18] : memref<128x1xf32, #tpu.memory_space<vmem>>, vector<128x1xf32>
    tpu.vector_store %arg13[%c0_17, %c0_18], %26 {strides = array<i32>} : memref<128x1xf32, #tpu.memory_space<vmem>>, vector<128x1xf32>,
    %c0_19 = arith.constant 0 : index
    %c0_20 = arith.constant 0 : index
    %28 = vector.load %arg14[%c0_19, %c0_20] : memref<128x128xf32, #tpu.memory_space<vmem>>, vector<128x128xf32>
    %29 = vector.broadcast %18 : vector<128x1xf32> to vector<128x128xf32>
    %30 = arith.mulf %29, %28 : vector<128x128xf32>
    %31 = arith.truncf %21 : vector<128x128xf32> to vector<128x128xbf16>
    %cst_21 = arith.constant dense<0.000000e+00> : vector<128x128xf32>
    %32 = tpu.matmul %31, %10, %cst_21 {dimension_numbers = #tpu.dot_dimension_numbers<[1], [0], [0], [1], [0, 0, 1, 1], [], []>} : vector<128x128xbf16>, vector<128x128xbf16>, vector<128x128xf32> -> vector<128x128xf32>
    %33 = arith.addf %30, %32 : vector<128x128xf32>
    %c0_22 = arith.constant 0 : index
    %c0_23 = arith.constant 0 : index
    %34 = vector.load %arg14[%c0_22, %c0_23] : memref<128x128xf32, #tpu.memory_space<vmem>>, vector<128x128xf32>
    tpu.vector_store %arg14[%c0_22, %c0_23], %33 {strides = array<i32>} : memref<128x128xf32, #tpu.memory_space<vmem>>, vector<128x128xf32>,
    %c0_24 = arith.constant 0 : index
    %c0_25 = arith.constant 0 : index
    %35 = vector.load %arg12[%c0_24, %c0_25] : memref<128x1xf32, #tpu.memory_space<vmem>>, vector<128x1xf32>
    tpu.vector_store %arg12[%c0_24, %c0_25], %16 {strides = array<i32>} : memref<128x1xf32, #tpu.memory_space<vmem>>, vector<128x1xf32>,
    %c1_i32 = arith.constant 1 : i32
    %36 = arith.cmpi eq, %arg2, %c1_i32 : i32
    %37 = arith.extui %36 : i1 to i32
    %c0_i32_26 = arith.constant 0 : i32
    %38 = arith.cmpi ne, %37, %c0_i32_26 : i32
    scf.if %38 {
      %c0_27 = arith.constant 0 : index
      %c0_28 = arith.constant 0 : index
      %39 = vector.load %arg14[%c0_27, %c0_28] : memref<128x128xf32, #tpu.memory_space<vmem>>, vector<128x128xf32>
      %c0_29 = arith.constant 0 : index
      %c0_30 = arith.constant 0 : index
      %40 = vector.load %arg13[%c0_29, %c0_30] : memref<128x1xf32, #tpu.memory_space<vmem>>, vector<128x1xf32>
      %41 = tpu.reciprocal %40 {approx = true} : vector<128x1xf32> -> vector<128x1xf32>
      %42 = vector.broadcast %41 : vector<128x1xf32> to vector<128x128xf32>
      %43 = arith.mulf %39, %42 : vector<128x128xf32>
      %44 = arith.truncf %43 : vector<128x128xf32> to vector<128x128xbf16>
      %c0_31 = arith.constant 0 : index
      %c0_32 = arith.constant 0 : index
      %45 = vector.load %arg8[%c0_31, %c0_32] : memref<128x128xbf16, #tpu.memory_space<vmem>>, vector<128x128xbf16>
      %cst_33 = arith.constant dense<0.000000e+00> : vector<128x128xf32>
      %46 = tpu.matmul %44, %45, %cst_33 {dimension_numbers = #tpu.dot_dimension_numbers<[1], [0], [0], [1], [0, 0, 1, 1], [], []>} : vector<128x128xbf16>, vector<128x128xbf16>, vector<128x128xf32> -> vector<128x128xf32>
      %c0_34 = arith.constant 0 : index
      %c0_35 = arith.constant 0 : index
      %47 = vector.load %arg9[%c0_34, %c0_35] : memref<1x128xf32, #tpu.memory_space<vmem>>, vector<1x128xf32>
      %48 = vector.broadcast %47 : vector<1x128xf32> to vector<128x128xf32>
      %49 = arith.addf %46, %48 : vector<128x128xf32>
      %c0_36 = arith.constant 0 : index
      %c0_37 = arith.constant 0 : index
      %c0_38 = arith.constant 0 : index
      %50 = vector.load %arg10[%c0_36, %c0_37, %c0_38] : memref<1x128x128xf32, #tpu.memory_space<vmem>>, vector<1x128x128xf32>
      %51 = vector.shape_cast %50 : vector<1x128x128xf32> to vector<128x128xf32>
      %52 = vector.shape_cast %49 : vector<128x128xf32> to vector<1x128x128xf32>
      tpu.vector_store %arg10[%c0_36, %c0_37, %c0_38], %52 {strides = array<i32>} : memref<1x128x128xf32, #tpu.memory_space<vmem>>, vector<1x128x128xf32>,
    } else {
    }
    return
  }
  func.func @transform_0(%arg0: i32, %arg1: i32, %arg2: i32) -> (i32, i32, i32) {
    %c0_i32 = arith.constant 0 : i32
    %c0_i32_0 = arith.constant 0 : i32
    return %arg0, %arg1, %c0_i32 : i32, i32, i32
  }
  func.func @transform_1(%arg0: i32, %arg1: i32, %arg2: i32) -> (i32, i32, i32) {
    %c0_i32 = arith.constant 0 : i32
    %c0_i32_0 = arith.constant 0 : i32
    return %arg0, %arg2, %c0_i32 : i32, i32, i32
  }
  func.func @transform_2(%arg0: i32, %arg1: i32, %arg2: i32) -> (i32, i32) {
    %c0_i32 = arith.constant 0 : i32
    %c0_i32_0 = arith.constant 0 : i32
    %c0_i32_1 = arith.constant 0 : i32
    return %c0_i32, %c0_i32_0 : i32, i32
  }
  func.func @transform_3(%arg0: i32, %arg1: i32, %arg2: i32) -> (i32, i32) {
    %c0_i32 = arith.constant 0 : i32
    %c0_i32_0 = arith.constant 0 : i32
    %c0_i32_1 = arith.constant 0 : i32
    return %c0_i32, %c0_i32_0 : i32, i32
  }
  func.func @transform_4(%arg0: i32, %arg1: i32, %arg2: i32) -> (i32, i32) {
    %c0_i32 = arith.constant 0 : i32
    %c0_i32_0 = arith.constant 0 : i32
    %c0_i32_1 = arith.constant 0 : i32
    return %c0_i32, %c0_i32_0 : i32, i32
  }
  func.func @transform_5(%arg0: i32, %arg1: i32, %arg2: i32) -> (i32, i32) {
    %c0_i32 = arith.constant 0 : i32
    %c0_i32_0 = arith.constant 0 : i32
    %c0_i32_1 = arith.constant 0 : i32
    return %c0_i32, %c0_i32_0 : i32, i32
  }
  func.func @transform_6(%arg0: i32, %arg1: i32, %arg2: i32) -> (i32, i32) {
    %c0_i32 = arith.constant 0 : i32
    %c0_i32_0 = arith.constant 0 : i32
    %c0_i32_1 = arith.constant 0 : i32
    return %c0_i32, %c0_i32_0 : i32, i32
  }
  func.func @transform_7(%arg0: i32, %arg1: i32, %arg2: i32) -> (i32, i32, i32) {
    %c0_i32 = arith.constant 0 : i32
    %c0_i32_0 = arith.constant 0 : i32
    return %arg0, %arg1, %c0_i32 : i32, i32, i32
  }
}

</mosaic_0001>

<llo_original>
// kernel: tpu_custom_call.1
$region0: #{tpu_custom_call.1}
  #allocation0 [shape = 'u32[]', space=smem, size = 0x4, offset = 0x4, fixed_abs, tag = 'smem constant byte address 0x4 - core index']
  #allocation1 [shape = 'u32[144,128]{1,0:T(1,128)}', space=vmem, size = 0x12000, scoped, tag = 'internal scratch']
  #allocation2 [shape = 'bf16[128,128]{1,0:T(8,128)(2,1)}', space=vmem, size = 0x8000, scoped, tag = 'scratch operand']
  #allocation3 [shape = 'f32[128,1]{1,0:T(8,128)}', space=vmem, size = 0x10000, scoped, tag = 'scratch operand']
  #allocation4 [shape = 'f32[128,1]{1,0:T(8,128)}', space=vmem, size = 0x10000, scoped, tag = 'scratch operand']
  #allocation5 [shape = 'f32[128,128]{1,0:T(8,128)}', space=vmem, size = 0x10000, scoped, tag = 'scratch operand']
  %s0 = inlined_call_operand.hbm [shape: bf16[2,256,128], index: 0, kind: input, shape index: {}]
  %s1 = inlined_call_operand.hbm [shape: bf16[2,256,128], index: 1, kind: input, shape index: {}]
  %s2 = inlined_call_operand.hbm [shape: bf16[128,128], index: 2, kind: input, shape index: {}]
  %s3 = inlined_call_operand.hbm [shape: bf16[128,128], index: 3, kind: input, shape index: {}]
  %s4 = inlined_call_operand.hbm [shape: bf16[128,128], index: 4, kind: input, shape index: {}]
  %s5 = inlined_call_operand.hbm [shape: bf16[128,128], index: 5, kind: input, shape index: {}]
  %s6 = inlined_call_operand.vmem [shape: f32[1,128], index: 6, kind: input, shape index: {}]
  %s7 = inlined_call_operand.hbm [shape: f32[2,256,128], index: 7, kind: output, shape index: {}]
  %s8 = sld [smem:[#allocation0]]
  $region93: #{tpu_custom_call.1} parent=0
    _
  %s10 = ssub.s32 1, %s8
  %s11 = scalar_select 0, %s10, %s8
  $region1: #{tpu_custom_call.1} parent=0
    #allocation6 [shape = 'u8[65536]{0}', space=vmem, size = 0x10000, scoped, tag = 'input window, operand 0']
    #allocation7 [shape = 's32[2]{0}', space=sflag, size = 0x8, scoped, tag = 'scoped memory for tpu_custom_call.1']
    #allocation8 [shape = 's32[2]{0}', space=sflag, size = 0x8, scoped, tag = 'scoped memory for tpu_custom_call.1']
    #allocation9 [shape = 'u8[65536]{0}', space=vmem, size = 0x10000, scoped, tag = 'input window, operand 1']
    #allocation10 [shape = 's32[2]{0}', space=sflag, size = 0x8, scoped, tag = 'scoped memory for tpu_custom_call.1']
    #allocation11 [shape = 'u8[32768]{0}', space=vmem, size = 0x8000, scoped, tag = 'input window, operand 2, single buffered']
    #allocation12 [shape = 'u8[32768]{0}', space=vmem, size = 0x8000, scoped, tag = 'input window, operand 3, single buffered']
    #allocation13 [shape = 's32[1]{0}', space=sflag, size = 0x4, scoped, tag = 'scoped memory for tpu_custom_call.1']
    #allocation14 [shape = 'u8[32768]{0}', space=vmem, size = 0x8000, scoped, tag = 'input window, operand 4, single buffered']
    #allocation15 [shape = 'u8[32768]{0}', space=vmem, size = 0x8000, scoped, tag = 'input window, operand 5, single buffered']
    #allocation16 [shape = 's32[1]{0}', space=sflag, size = 0x4, scoped, tag = 'scoped memory for tpu_custom_call.1']
    #allocation17 [shape = 'u8[131072]{0}', space=vmem, size = 0x20000, scoped, tag = 'output window, operand 0']
    %12 = vsyncpa [#allocation7], 0
    %s13 = scalar_lea.sflag [#allocation7], 1
    %14 = vsyncpa %s13, 0
    %15 = vsyncpa [#allocation10], 0
    %s16 = scalar_lea.sflag [#allocation10], 1
    %17 = vsyncpa %s16, 0
    %18 = vsyncpa [#allocation13], 0
    %19 = vsyncpa [#allocation16], 0
    %20 = vsyncpa [#allocation8], 0
    %s21 = scalar_lea.sflag [#allocation8], 1
    %22 = vsyncpa %s21, 0
    loop: start=0, step=1, limit=10
    $region2: #{tpu_custom_call.1} parent=1 // loop_pre_header
      _
    $region3: #{tpu_custom_call.1} parent=1 // loop_header
      %s24 = sphi 0, %s28
      %p25 = scmp.ge.s32.totalorder %s24, 10
      %s31 = sphi 0, %s50
      %s32 = sphi 0, %s46
      %s33 = sphi 0, %s42
      %s34 = sphi 0, %s31
      %s35 = sphi 0, %s32
      %s36 = sphi 0, %s33
      %s37 = sphi 0, %s34
      %s38 = sphi 0, %s35
      %s39 = sphi 0, %s36
      %s55 = sphi 0, %s57
      %s58 = sphi 0, %s55
      %s59 = sphi 0, %s58
      %s75 = sphi 0, %s59
      %s83 = sphi 0, %s85
      %s86 = sphi 0, %s83
      %s87 = sphi 0, %s86
      %s103 = sphi 0, %s87
      %s107 = sphi 0, %s107
      %s109 = sphi 0, %s107
      %s110 = sphi 0, %s109
      %s124 = sphi 0, %s110
      %s128 = sphi 0, %s128
      %s130 = sphi 0, %s128
      %s131 = sphi 0, %s130
      %s145 = sphi 0, %s131
      %s149 = sphi 0, %s149
      %s151 = sphi 0, %s149
      %s152 = sphi 0, %s151
      %s166 = sphi 0, %s152
      %s170 = sphi 0, %s170
      %s172 = sphi 0, %s170
      %s173 = sphi 0, %s172
      %s187 = sphi 0, %s173
      %s191 = sphi 0, %s191
      %s193 = sphi 0, %s191
      %s194 = sphi 0, %s193
      %s208 = sphi 0, %s194
      %s216 = sphi 0, %s218
      %s219 = sphi 0, %s216
      %s220 = sphi 0, %s219
      %s236 = sphi 0, %s220
    $region4: #{tpu_custom_call.1} parent=1 // loop_header_branch
      %27 = sbr.rel (%p25) target = $region8
    $region5: #{tpu_custom_call.1} parent=1 // loop_body
      %s29 = ssub.s32 %s24, 1
      %s30 = ssub.s32 %s24, 2
      %s40 = sadd.s32 1, %s33
      %p41 = scmp.ge.s32.totalorder %s40, 2
      %s42 = scalar_select %p41, 0, %s40
      %s43 = sadd.s32 1, %s32
      %s44 = scalar_select %p41, %s43, %s32
      %p45 = scmp.ge.s32.totalorder %s44, 2
      %s46 = scalar_select %p45, 0, %s44
      %s47 = sadd.s32 1, %s31
      %s48 = scalar_select %p45, %s47, %s31
      %p49 = scmp.ge.s32.totalorder %s48, 2
      %s50 = scalar_select %p49, 0, %s48
      %s51 = ssub.s32 %s31, %s50
      %s52 = ssub.s32 %s32, %s46
      %s53 = sor.u32 %s51, %s52
      %p54 = scmp.eq.s32.totalorder %s53, 0
      %s56 = sadd.s32 %s55, 1
      %s57 = scalar_select %p54, %s55, %s56
      %p60 = pneg %p54
      %p61 = scmp.eq.s32.totalorder %s24, 7
      %p62 = por %p60, %p61
      %p63 = scmp.ne.s32.totalorder %s55, %s58
      %p64 = scmp.eq.s32.totalorder %s24, 0
      %p65 = por %p63, %p64
      %p66 = scmp.ne.s32.totalorder %s55, %s58
      %p67 = scmp.eq.s32.totalorder %s29, 7
      %p68 = por %p66, %p67
      %p69 = scmp.ne.s32.totalorder %s58, %s59
      %p70 = scmp.eq.s32.totalorder %s29, 0
      %p71 = por %p69, %p70
      %p72 = scmp.ne.s32.totalorder %s58, %s59
      %p73 = scmp.eq.s32.totalorder %s30, 7
      %p74 = por %p72, %p73
      %p76 = scmp.ne.s32.totalorder %s59, %s75
      %p77 = scmp.eq.s32.totalorder %s30, 0
      %p78 = por %p76, %p77
      %s79 = ssub.s32 %s31, %s50
      %s80 = ssub.s32 %s33, %s42
      %s81 = sor.u32 %s79, %s80
      %p82 = scmp.eq.s32.totalorder %s81, 0
      %s84 = sadd.s32 %s83, 1
      %s85 = scalar_select %p82, %s83, %s84
      %p88 = pneg %p82
      %p89 = scmp.eq.s32.totalorder %s24, 7
      %p90 = por %p88, %p89
      %p91 = scmp.ne.s32.totalorder %s83, %s86
      %p92 = scmp.eq.s32.totalorder %s24, 0
      %p93 = por %p91, %p92
      %p94 = scmp.ne.s32.totalorder %s83, %s86
      %p95 = scmp.eq.s32.totalorder %s29, 7
      %p96 = por %p94, %p95
      %p97 = scmp.ne.s32.totalorder %s86, %s87
      %p98 = scmp.eq.s32.totalorder %s29, 0
      %p99 = por %p97, %p98
      %p100 = scmp.ne.s32.totalorder %s86, %s87
      %p101 = scmp.eq.s32.totalorder %s30, 7
      %p102 = por %p100, %p101
      %p104 = scmp.ne.s32.totalorder %s87, %s103
      %p105 = scmp.eq.s32.totalorder %s30, 0
      %p106 = por %p104, %p105
      %s108 = sadd.s32 %s107, 1
      %p111 = scmp.eq.s32.totalorder %s24, 7
      %p112 = scmp.ne.s32.totalorder %s107, %s109
      %p113 = scmp.eq.s32.totalorder %s24, 0
      %p114 = por %p112, %p113
      %p115 = scmp.ne.s32.totalorder %s107, %s109
      %p116 = scmp.eq.s32.totalorder %s29, 7
      %p117 = por %p115, %p116
      %p118 = scmp.ne.s32.totalorder %s109, %s110
      %p119 = scmp.eq.s32.totalorder %s29, 0
      %p120 = por %p118, %p119
      %p121 = scmp.ne.s32.totalorder %s109, %s110
      %p122 = scmp.eq.s32.totalorder %s30, 7
      %p123 = por %p121, %p122
      %p125 = scmp.ne.s32.totalorder %s110, %s124
      %p126 = scmp.eq.s32.totalorder %s30, 0
      %p127 = por %p125, %p126
      %s129 = sadd.s32 %s128, 1
      %p132 = scmp.eq.s32.totalorder %s24, 7
      %p133 = scmp.ne.s32.totalorder %s128, %s130
      %p134 = scmp.eq.s32.totalorder %s24, 0
      %p135 = por %p133, %p134
      %p136 = scmp.ne.s32.totalorder %s128, %s130
      %p137 = scmp.eq.s32.totalorder %s29, 7
      %p138 = por %p136, %p137
      %p139 = scmp.ne.s32.totalorder %s130, %s131
      %p140 = scmp.eq.s32.totalorder %s29, 0
      %p141 = por %p139, %p140
      %p142 = scmp.ne.s32.totalorder %s130, %s131
      %p143 = scmp.eq.s32.totalorder %s30, 7
      %p144 = por %p142, %p143
      %p146 = scmp.ne.s32.totalorder %s131, %s145
      %p147 = scmp.eq.s32.totalorder %s30, 0
      %p148 = por %p146, %p147
      %s150 = sadd.s32 %s149, 1
      %p153 = scmp.eq.s32.totalorder %s24, 7
      %p154 = scmp.ne.s32.totalorder %s149, %s151
      %p155 = scmp.eq.s32.totalorder %s24, 0
      %p156 = por %p154, %p155
      %p157 = scmp.ne.s32.totalorder %s149, %s151
      %p158 = scmp.eq.s32.totalorder %s29, 7
      %p159 = por %p157, %p158
      %p160 = scmp.ne.s32.totalorder %s151, %s152
      %p161 = scmp.eq.s32.totalorder %s29, 0
      %p162 = por %p160, %p161
      %p163 = scmp.ne.s32.totalorder %s151, %s152
      %p164 = scmp.eq.s32.totalorder %s30, 7
      %p165 = por %p163, %p164
      %p167 = scmp.ne.s32.totalorder %s152, %s166
      %p168 = scmp.eq.s32.totalorder %s30, 0
      %p169 = por %p167, %p168
      %s171 = sadd.s32 %s170, 1
      %p174 = scmp.eq.s32.totalorder %s24, 7
      %p175 = scmp.ne.s32.totalorder %s170, %s172
      %p176 = scmp.eq.s32.totalorder %s24, 0
      %p177 = por %p175, %p176
      %p178 = scmp.ne.s32.totalorder %s170, %s172
      %p179 = scmp.eq.s32.totalorder %s29, 7
      %p180 = por %p178, %p179
      %p181 = scmp.ne.s32.totalorder %s172, %s173
      %p182 = scmp.eq.s32.totalorder %s29, 0
      %p183 = por %p181, %p182
      %p184 = scmp.ne.s32.totalorder %s172, %s173
      %p185 = scmp.eq.s32.totalorder %s30, 7
      %p186 = por %p184, %p185
      %p188 = scmp.ne.s32.totalorder %s173, %s187
      %p189 = scmp.eq.s32.totalorder %s30, 0
      %p190 = por %p188, %p189
      %s192 = sadd.s32 %s191, 1
      %p195 = scmp.eq.s32.totalorder %s24, 7
      %p196 = scmp.ne.s32.totalorder %s191, %s193
      %p197 = scmp.eq.s32.totalorder %s24, 0
      %p198 = por %p196, %p197
      %p199 = scmp.ne.s32.totalorder %s191, %s193
      %p200 = scmp.eq.s32.totalorder %s29, 7
      %p201 = por %p199, %p200
      %p202 = scmp.ne.s32.totalorder %s193, %s194
      %p203 = scmp.eq.s32.totalorder %s29, 0
      %p204 = por %p202, %p203
      %p205 = scmp.ne.s32.totalorder %s193, %s194
      %p206 = scmp.eq.s32.totalorder %s30, 7
      %p207 = por %p205, %p206
      %p209 = scmp.ne.s32.totalorder %s194, %s208
      %p210 = scmp.eq.s32.totalorder %s30, 0
      %p211 = por %p209, %p210
      %s212 = ssub.s32 %s31, %s50
      %s213 = ssub.s32 %s32, %s46
      %s214 = sor.u32 %s212, %s213
      %p215 = scmp.eq.s32.totalorder %s214, 0
      %s217 = sadd.s32 %s216, 1
      %s218 = scalar_select %p215, %s216, %s217
      %p221 = pneg %p215
      %p222 = scmp.eq.s32.totalorder %s24, 7
      %p223 = por %p221, %p222
      %p224 = scmp.ne.s32.totalorder %s216, %s219
      %p225 = scmp.eq.s32.totalorder %s24, 0
      %p226 = por %p224, %p225
      %p227 = scmp.ne.s32.totalorder %s216, %s219
      %p228 = scmp.eq.s32.totalorder %s29, 7
      %p229 = por %p227, %p228
      %p230 = scmp.ne.s32.totalorder %s219, %s220
      %p231 = scmp.eq.s32.totalorder %s29, 0
      %p232 = por %p230, %p231
      %p233 = scmp.ne.s32.totalorder %s219, %s220
      %p234 = scmp.eq.s32.totalorder %s30, 7
      %p235 = por %p233, %p234
      %p237 = scmp.ne.s32.totalorder %s220, %s236
      %p238 = scmp.eq.s32.totalorder %s30, 0
      %p239 = por %p237, %p238
      %p240 = scmp.le.s32.totalorder 1, %s24
      %p241 = scmp.lt.s32.totalorder %s24, 9
      %p242 = pnand %p240, %p241
      %p243 = pneg %p242
      // Predicated region
      $region9: #{tpu_custom_call.1} parent=5 // pred_check
        _
      $region10: #{tpu_custom_call.1} parent=5 // pred_check_branch
        %245 = sbr.rel (%p242) target = $region12
      $region11: #{tpu_custom_call.1} parent=5 // pred_region
        %s246 = ssub.s32 %s24, 1
        // Predicated region
        $region13: #{tpu_custom_call.1} parent=11 // pred_check
          %p247 = pneg %p120
        $region14: #{tpu_custom_call.1} parent=11 // pred_check_branch
          %249 = sbr.rel (%p247) target = $region16
        $region15: #{tpu_custom_call.1} parent=11 // pred_region
          %s251 = ssub.s32 1024, 1024
          %252 = vsyncadd [#allocation10], %s251
          %s253 = sshll.u32 [#allocation11], 4
          %s254 = int_to_ptr.vmem [resolvable:$true] %s253
          %259 = dma.hbm_to_vmem [thread:$0]  %s2, 1024, %s254, [#allocation10], 64, 64, 4
        $region16: #{tpu_custom_call.1} parent=11 // pred_fallthru
          _
        // Predicated region
        $region17: #{tpu_custom_call.1} parent=11 // pred_check
          %p260 = pneg %p141
        $region18: #{tpu_custom_call.1} parent=11 // pred_check_branch
          %262 = sbr.rel (%p260) target = $region20
        $region19: #{tpu_custom_call.1} parent=11 // pred_region
          %s264 = ssub.s32 1024, 1024
          %265 = vsyncadd [#allocation13], %s264
          %s266 = sshll.u32 [#allocation12], 4
          %s267 = int_to_ptr.vmem [resolvable:$true] %s266
          %272 = dma.hbm_to_vmem [thread:$0]  %s3, 1024, %s267, [#allocation13], 64, 64, 4
        $region20: #{tpu_custom_call.1} parent=11 // pred_fallthru
          _
        // Predicated region
        $region21: #{tpu_custom_call.1} parent=11 // pred_check
          %p273 = pneg %p162
        $region22: #{tpu_custom_call.1} parent=11 // pred_check_branch
          %275 = sbr.rel (%p273) target = $region24
        $region23: #{tpu_custom_call.1} parent=11 // pred_region
          %s277 = ssub.s32 1024, 1024
          %278 = vsyncadd [#allocation13], %s277
          %s279 = sshll.u32 [#allocation14], 4
          %s280 = int_to_ptr.vmem [resolvable:$true] %s279
          %285 = dma.hbm_to_vmem [thread:$0]  %s4, 1024, %s280, [#allocation13], 64, 64, 4
        $region24: #{tpu_custom_call.1} parent=11 // pred_fallthru
          _
        // Predicated region
        $region25: #{tpu_custom_call.1} parent=11 // pred_check
          %p286 = pneg %p183
        $region26: #{tpu_custom_call.1} parent=11 // pred_check_branch
          %288 = sbr.rel (%p286) target = $region28
        $region27: #{tpu_custom_call.1} parent=11 // pred_region
          %s290 = ssub.s32 1024, 1024
          %291 = vsyncadd [#allocation16], %s290
          %s292 = sshll.u32 [#allocation15], 4
          %s293 = int_to_ptr.vmem [resolvable:$true] %s292
          %298 = dma.hbm_to_vmem [thread:$0]  %s5, 1024, %s293, [#allocation16], 64, 64, 4
        $region28: #{tpu_custom_call.1} parent=11 // pred_fallthru
          _
        // Predicated region
        $region29: #{tpu_custom_call.1} parent=11 // pred_check
          %p299 = pneg %p204
        $region30: #{tpu_custom_call.1} parent=11 // pred_check_branch
          %301 = sbr.rel (%p299) target = $region32
        $region31: #{tpu_custom_call.1} parent=11 // pred_region
          _
        $region32: #{tpu_custom_call.1} parent=11 // pred_fallthru
          _
      $region12: #{tpu_custom_call.1} parent=5 // pred_fallthru
        _
      %p302 = scmp.lt.s32.totalorder %s24, 8
      // Predicated region
      $region33: #{tpu_custom_call.1} parent=5 // pred_check
        %p303 = pneg %p302
      $region34: #{tpu_custom_call.1} parent=5 // pred_check_branch
        %305 = sbr.rel (%p303) target = $region36
      $region35: #{tpu_custom_call.1} parent=5 // pred_region
        // Predicated region
        $region37: #{tpu_custom_call.1} parent=35 // pred_check
          %p306 = pneg %p65
        $region38: #{tpu_custom_call.1} parent=35 // pred_check_branch
          %308 = sbr.rel (%p306) target = $region40
        $region39: #{tpu_custom_call.1} parent=35 // pred_region
          %s309 = sand.u32 %s55, 1
          %s310 = scalar_lea.sflag [#allocation7], %s309
          %s311 = sand.u32 %s55, 1
          %s312 = smul.addr %s311, 64
          %s313 = scalar_lea.vmem [#allocation6], %s312
          %s314 = smul.u32 16, %s32
          %s316 = ssub.s32 1024, 1024
          %317 = vsyncadd %s310, %s316
          %s318 = smul.addr %s31, 32
          %s319 = sadd.s32 %s314, %s318
          %s320 = smul.addr %s319, 64
          %s321 = scalar_lea.hbm %s0, %s320
          %s322 = sshll.u32 %s313, 4
          %s323 = int_to_ptr.vmem [resolvable:$true] %s322
          %328 = dma.hbm_to_vmem [thread:$0]  %s321, 1024, %s323, %s310, 64, 64, 4
        $region40: #{tpu_custom_call.1} parent=35 // pred_fallthru
          _
        // Predicated region
        $region41: #{tpu_custom_call.1} parent=35 // pred_check
          %p329 = pneg %p93
        $region42: #{tpu_custom_call.1} parent=35 // pred_check_branch
          %331 = sbr.rel (%p329) target = $region44
        $region43: #{tpu_custom_call.1} parent=35 // pred_region
          %s332 = sand.u32 %s24, 1
          %s333 = scalar_lea.sflag [#allocation10], %s332
          %s334 = sand.u32 %s83, 1
          %s335 = smul.addr %s334, 64
          %s336 = scalar_lea.vmem [#allocation9], %s335
          %s337 = smul.u32 16, %s33
          %s339 = ssub.s32 1024, 1024
          %340 = vsyncadd %s333, %s339
          %s341 = smul.addr %s31, 32
          %s342 = sadd.s32 %s337, %s341
          %s343 = smul.addr %s342, 64
          %s344 = scalar_lea.hbm %s1, %s343
          %s345 = sshll.u32 %s336, 4
          %s346 = int_to_ptr.vmem [resolvable:$true] %s345
          %351 = dma.hbm_to_vmem [thread:$0]  %s344, 1024, %s346, %s333, 64, 64, 4
        $region44: #{tpu_custom_call.1} parent=35 // pred_fallthru
          _
      $region36: #{tpu_custom_call.1} parent=5 // pred_fallthru
        _
      %p352 = scmp.le.s32.totalorder 1, %s24
      %p353 = scmp.lt.s32.totalorder %s24, 9
      %p354 = pnand %p352, %p353
      %p355 = pneg %p354
      // Predicated region
      $region45: #{tpu_custom_call.1} parent=5 // pred_check
        _
      $region46: #{tpu_custom_call.1} parent=5 // pred_check_branch
        %357 = sbr.rel (%p354) target = $region48
      $region47: #{tpu_custom_call.1} parent=5 // pred_region
        %s358 = ssub.s32 %s24, 1
        %s359 = sand.u32 %s58, 1
        %s360 = scalar_lea.sflag [#allocation7], %s359
        %s361 = sand.u32 %s58, 1
        %s362 = smul.addr %s361, 64
        %s363 = scalar_lea.vmem [#allocation6], %s362
        // Predicated region
        $region49: #{tpu_custom_call.1} parent=47 // pred_check
          %p364 = pneg %p71
        $region50: #{tpu_custom_call.1} parent=47 // pred_check_branch
          %366 = sbr.rel (%p364) target = $region52
        $region51: #{tpu_custom_call.1} parent=47 // pred_region
          %367 = dma.done %s360, 1024
        $region52: #{tpu_custom_call.1} parent=47 // pred_fallthru
          _
        %s368 = sand.u32 %s29, 1
        %s369 = scalar_lea.sflag [#allocation10], %s368
        %s370 = sand.u32 %s86, 1
        %s371 = smul.addr %s370, 64
        %s372 = scalar_lea.vmem [#allocation9], %s371
        // Predicated region
        $region53: #{tpu_custom_call.1} parent=47 // pred_check
          %p373 = pneg %p99
        $region54: #{tpu_custom_call.1} parent=47 // pred_check_branch
          %375 = sbr.rel (%p373) target = $region56
        $region55: #{tpu_custom_call.1} parent=47 // pred_region
          %376 = dma.done %s369, 1024
        $region56: #{tpu_custom_call.1} parent=47 // pred_fallthru
          _
        // Predicated region
        $region57: #{tpu_custom_call.1} parent=47 // pred_check
          %p377 = pneg %p120
        $region58: #{tpu_custom_call.1} parent=47 // pred_check_branch
          %379 = sbr.rel (%p377) target = $region60
        $region59: #{tpu_custom_call.1} parent=47 // pred_region
          %380 = dma.done [#allocation10], 1024
        $region60: #{tpu_custom_call.1} parent=47 // pred_fallthru
          _
        // Predicated region
        $region61: #{tpu_custom_call.1} parent=47 // pred_check
          %p381 = pneg %p141
        $region62: #{tpu_custom_call.1} parent=47 // pred_check_branch
          %383 = sbr.rel (%p381) target = $region64
        $region63: #{tpu_custom_call.1} parent=47 // pred_region
          %384 = dma.done [#allocation13], 1024
        $region64: #{tpu_custom_call.1} parent=47 // pred_fallthru
          _
        // Predicated region
        $region65: #{tpu_custom_call.1} parent=47 // pred_check
          %p385 = pneg %p162
        $region66: #{tpu_custom_call.1} parent=47 // pred_check_branch
          %387 = sbr.rel (%p385) target = $region68
        $region67: #{tpu_custom_call.1} parent=47 // pred_region
          %388 = dma.done [#allocation13], 1024
        $region68: #{tpu_custom_call.1} parent=47 // pred_fallthru
          _
        // Predicated region
        $region69: #{tpu_custom_call.1} parent=47 // pred_check
          %p389 = pneg %p183
        $region70: #{tpu_custom_call.1} parent=47 // pred_check_branch
          %391 = sbr.rel (%p389) target = $region72
        $region71: #{tpu_custom_call.1} parent=47 // pred_region
          %392 = dma.done [#allocation16], 1024
        $region72: #{tpu_custom_call.1} parent=47 // pred_fallthru
          _
        %s393 = sand.u32 %s58, 1
        %s394 = scalar_lea.sflag [#allocation7], %s393
        %s395 = sand.u32 %s58, 1
        %s396 = smul.addr %s395, 64
        %s397 = scalar_lea.vmem [#allocation6], %s396
        %p398 = pneg %p71
        %p399 = pneg %p68
        %s400 = sand.u32 %s29, 1
        %s401 = scalar_lea.sflag [#allocation10], %s400
        %s402 = sand.u32 %s86, 1
        %s403 = smul.addr %s402, 64
        %s404 = scalar_lea.vmem [#allocation9], %s403
        %p405 = pneg %p99
        %p406 = pneg %p96
        %p407 = pneg %p120
        %p408 = pneg %p117
        %p409 = pneg %p141
        %p410 = pneg %p138
        %p411 = pneg %p162
        %p412 = pneg %p159
        %p413 = pneg %p183
        %p414 = pneg %p180
        %p415 = pneg %p204
        %p416 = pneg %p201
        %p417 = pneg %p232
        %p418 = pneg %p229
        %s419 = sand.u32 %s219, 1
        %s420 = scalar_lea.sflag [#allocation8], %s419
        %s421 = sand.u32 %s219, 1
        %s422 = smul.addr %s421, 128
        %s423 = scalar_lea.vmem [#allocation17], %s422
        %s424 = smul.u32 16, %s35
        %s425 = smul.u32 16, %s36
        %s426 = smul.u32 16, %s35
        %p428 = scmp.eq.s32.totalorder %s36, 0
        // Predicated region
        $region73: #{tpu_custom_call.1} parent=47 // pred_check
          %p429 = pneg %p428
        $region74: #{tpu_custom_call.1} parent=47 // pred_check_branch
          %431 = sbr.rel (%p429) target = $region76
        $region75: #{tpu_custom_call.1} parent=47 // pred_region
          %v432 = vld [vmem:[%s363] sm:$0xf]
          %v433 = vld [vmem:[%s363 + $0x4] sm:$0xf]
          %v434 = vld [vmem:[%s363 + $0x8] sm:$0xf]
          %v435 = vld [vmem:[%s363 + $0xc] sm:$0xf]
          %v436 = vld [vmem:[%s363 + $0x10] sm:$0xf]
          %v437 = vld [vmem:[%s363 + $0x14] sm:$0xf]
          %v438 = vld [vmem:[%s363 + $0x18] sm:$0xf]
          %v439 = vld [vmem:[%s363 + $0x1c] sm:$0xf]
          %v440 = vld [vmem:[%s363 + $0x20] sm:$0xf]
          %v441 = vld [vmem:[%s363 + $0x24] sm:$0xf]
          %v442 = vld [vmem:[%s363 + $0x28] sm:$0xf]
          %v443 = vld [vmem:[%s363 + $0x2c] sm:$0xf]
          %v444 = vld [vmem:[%s363 + $0x30] sm:$0xf]
          %v445 = vld [vmem:[%s363 + $0x34] sm:$0xf]
          %v446 = vld [vmem:[%s363 + $0x38] sm:$0xf]
          %v447 = vld [vmem:[%s363 + $0x3c] sm:$0xf]
          %v448 = vld [vmem:[#allocation11] sm:$0xf]
          %v449 = vld [vmem:[#allocation11 + $0x4] sm:$0xf]
          %v450 = vld [vmem:[#allocation11 + $0x8] sm:$0xf]
          %v451 = vld [vmem:[#allocation11 + $0xc] sm:$0xf]
          %v452 = vld [vmem:[#allocation11 + $0x10] sm:$0xf]
          %v453 = vld [vmem:[#allocation11 + $0x14] sm:$0xf]
          %v454 = vld [vmem:[#allocation11 + $0x18] sm:$0xf]
          %v455 = vld [vmem:[#allocation11 + $0x1c] sm:$0xf]
          %v456 = vld [vmem:[#allocation11 + $0x20] sm:$0xf]
          %v457 = vld [vmem:[#allocation11 + $0x24] sm:$0xf]
          %v458 = vld [vmem:[#allocation11 + $0x28] sm:$0xf]
          %v459 = vld [vmem:[#allocation11 + $0x2c] sm:$0xf]
          %v460 = vld [vmem:[#allocation11 + $0x30] sm:$0xf]
          %v461 = vld [vmem:[#allocation11 + $0x34] sm:$0xf]
          %v462 = vld [vmem:[#allocation11 + $0x38] sm:$0xf]
          %v463 = vld [vmem:[#allocation11 + $0x3c] sm:$0xf]
          %v480 = vunpack.c.l.b16 %v432
          %v481 = vunpack.c.l.b16 %v433
          %v482 = vunpack.c.l.b16 %v434
          %v483 = vunpack.c.l.b16 %v435
          %v484 = vunpack.c.l.b16 %v436
          %v485 = vunpack.c.l.b16 %v437
          %v486 = vunpack.c.l.b16 %v438
          %v487 = vunpack.c.l.b16 %v439
          %v488 = vunpack.c.l.b16 %v440
          %v489 = vunpack.c.l.b16 %v441
          %v490 = vunpack.c.l.b16 %v442
          %v491 = vunpack.c.l.b16 %v443
          %v492 = vunpack.c.l.b16 %v444
          %v493 = vunpack.c.l.b16 %v445
          %v494 = vunpack.c.l.b16 %v446
          %v495 = vunpack.c.l.b16 %v447
          %v496 = vpack.c.b16 %v481, %v480
          %v497 = vpack.c.b16 %v483, %v482
          %v498 = vpack.c.b16 %v485, %v484
          %v499 = vpack.c.b16 %v487, %v486
          %v500 = vpack.c.b16 %v489, %v488
          %v501 = vpack.c.b16 %v491, %v490
          %v502 = vpack.c.b16 %v493, %v492
          %v503 = vpack.c.b16 %v495, %v494
          %v528 = vunpack.c.l.b16 %v448
          %v529 = vunpack.c.l.b16 %v449
          %v530 = vunpack.c.l.b16 %v450
          %v531 = vunpack.c.l.b16 %v451
          %v532 = vunpack.c.l.b16 %v452
          %v533 = vunpack.c.l.b16 %v453
          %v534 = vunpack.c.l.b16 %v454
          %v535 = vunpack.c.l.b16 %v455
          %v536 = vunpack.c.l.b16 %v456
          %v537 = vunpack.c.l.b16 %v457
          %v538 = vunpack.c.l.b16 %v458
          %v539 = vunpack.c.l.b16 %v459
          %v540 = vunpack.c.l.b16 %v460
          %v541 = vunpack.c.l.b16 %v461
          %v542 = vunpack.c.l.b16 %v462
          %v543 = vunpack.c.l.b16 %v463
          %v544 = vpack.c.b16 %v529, %v528
          %v545 = vpack.c.b16 %v531, %v530
          %v546 = vpack.c.b16 %v533, %v532
          %v547 = vpack.c.b16 %v535, %v534
          %v548 = vpack.c.b16 %v537, %v536
          %v549 = vpack.c.b16 %v539, %v538
          %v550 = vpack.c.b16 %v541, %v540
          %v551 = vpack.c.b16 %v543, %v542
          %560 = vmatprep.subr.bf16.mxu0 0
          %561 = vmatpush1.bf16.msra.mxu0 %v551
          %562 = vmatprep.subr.bf16.mxu0 0
          %563 = vmatpush1.bf16.msra.mxu0 %v550
          %564 = vmatprep.subr.bf16.mxu0 0
          %565 = vmatpush1.bf16.msra.mxu0 %v549
          %566 = vmatprep.subr.bf16.mxu0 0
          %567 = vmatpush1.bf16.msra.mxu0 %v548
          %568 = vmatprep.subr.bf16.mxu0 0
          %569 = vmatpush1.bf16.msra.mxu0 %v547
          %570 = vmatprep.subr.bf16.mxu0 0
          %571 = vmatpush1.bf16.msra.mxu0 %v546
          %572 = vmatprep.subr.bf16.mxu0 0
          %573 = vmatpush1.bf16.msra.mxu0 %v545
          %574 = vmatprep.subr.bf16.mxu0 0
          %575 = vmatpush1.bf16.msra.mxu0 %v544
          %576 = vmatprep.subr.bf16.mxu0 0
          %577 = vmatpush2.bf16.msra.mxu0 0
          %578 = vmatprep.subr.bf16.mxu0 0
          %579 = vmatpush2.bf16.msra.mxu0 0
          %580 = vmatprep.subr.bf16.mxu0 0
          %581 = vmatpush2.bf16.msra.mxu0 0
          %582 = vmatprep.subr.bf16.mxu0 0
          %583 = vmatpush2.bf16.msra.mxu0 0
          %584 = vmatprep.subr.bf16.mxu0 0
          %585 = vmatpush2.bf16.msra.mxu0 0
          %586 = vmatprep.subr.bf16.mxu0 0
          %587 = vmatpush2.bf16.msra.mxu0 0
          %588 = vmatprep.subr.bf16.mxu0 0
          %589 = vmatpush2.bf16.msra.mxu0 0
          %590 = vmatprep.subr.bf16.mxu0 0
          %591 = vmatpush2.bf16.msra.mxu0 0
          %592 = vmatprep.mubr.bf16.mxu0 0
          %593 = vmatmul.mubr.bf16.gmra.mxu0 %v496
          %v594 = vpop.f32.mrf.mxu0
          %v595 = vadd.f32 0.0, %v594
          %v596 = vpop.f32.mrf.mxu0
          %v597 = vpop.f32.mrf.mxu0
          %v598 = vadd.f32 0.0, %v597
          %v599 = vpop.f32.mrf.mxu0
          %600 = vmatprep.mubr.bf16.mxu0 0
          %601 = vmatmul.mubr.bf16.gmra.mxu0 %v497
          %v602 = vpop.f32.mrf.mxu0
          %v603 = vadd.f32 0.0, %v602
          %v604 = vpop.f32.mrf.mxu0
          %v605 = vpop.f32.mrf.mxu0
          %v606 = vadd.f32 0.0, %v605
          %v607 = vpop.f32.mrf.mxu0
          %608 = vmatprep.mubr.bf16.mxu0 0
          %609 = vmatmul.mubr.bf16.gmra.mxu0 %v498
          %v610 = vpop.f32.mrf.mxu0
          %v611 = vadd.f32 0.0, %v610
          %v612 = vpop.f32.mrf.mxu0
          %v613 = vpop.f32.mrf.mxu0
          %v614 = vadd.f32 0.0, %v613
          %v615 = vpop.f32.mrf.mxu0
          %616 = vmatprep.mubr.bf16.mxu0 0
          %617 = vmatmul.mubr.bf16.gmra.mxu0 %v499
          %v618 = vpop.f32.mrf.mxu0
          %v619 = vadd.f32 0.0, %v618
          %v620 = vpop.f32.mrf.mxu0
          %v621 = vpop.f32.mrf.mxu0
          %v622 = vadd.f32 0.0, %v621
          %v623 = vpop.f32.mrf.mxu0
          %624 = vmatprep.mubr.bf16.mxu0 0
          %625 = vmatmul.mubr.bf16.gmra.mxu0 %v500
          %v626 = vpop.f32.mrf.mxu0
          %v627 = vadd.f32 0.0, %v626
          %v628 = vpop.f32.mrf.mxu0
          %v629 = vpop.f32.mrf.mxu0
          %v630 = vadd.f32 0.0, %v629
          %v631 = vpop.f32.mrf.mxu0
          %632 = vmatprep.mubr.bf16.mxu0 0
          %633 = vmatmul.mubr.bf16.gmra.mxu0 %v501
          %v634 = vpop.f32.mrf.mxu0
          %v635 = vadd.f32 0.0, %v634
          %v636 = vpop.f32.mrf.mxu0
          %v637 = vpop.f32.mrf.mxu0
          %v638 = vadd.f32 0.0, %v637
          %v639 = vpop.f32.mrf.mxu0
          %640 = vmatprep.mubr.bf16.mxu0 0
          %641 = vmatmul.mubr.bf16.gmra.mxu0 %v502
          %v642 = vpop.f32.mrf.mxu0
          %v643 = vadd.f32 0.0, %v642
          %v644 = vpop.f32.mrf.mxu0
          %v645 = vpop.f32.mrf.mxu0
          %v646 = vadd.f32 0.0, %v645
          %v647 = vpop.f32.mrf.mxu0
          %648 = vmatprep.mubr.bf16.mxu0 0
          %649 = vmatmul.mubr.bf16.gmra.mxu0 %v503
          %v650 = vpop.f32.mrf.mxu0
          %v651 = vadd.f32 0.0, %v650
          %v652 = vpop.f32.mrf.mxu0
          %v653 = vpop.f32.mrf.mxu0
          %v654 = vadd.f32 0.0, %v653
          %v655 = vpop.f32.mrf.mxu0
          %656 = vdwg.mxu0
          %v657 = vpack.c.bf16 %v598, %v595
          %v658 = vpack.c.bf16 %v606, %v603
          %v659 = vpack.c.bf16 %v614, %v611
          %v660 = vpack.c.bf16 %v622, %v619
          %v661 = vpack.c.bf16 %v630, %v627
          %v662 = vpack.c.bf16 %v638, %v635
          %v663 = vpack.c.bf16 %v646, %v643
          %v664 = vpack.c.bf16 %v654, %v651
          %v673 = vunpack.c.l.b16 %v657
          %v674 = vunpack.c.h.b16 %v657
          %v675 = vunpack.c.l.b16 %v658
          %v676 = vunpack.c.h.b16 %v658
          %v677 = vunpack.c.l.b16 %v659
          %v678 = vunpack.c.h.b16 %v659
          %v679 = vunpack.c.l.b16 %v660
          %v680 = vunpack.c.h.b16 %v660
          %v681 = vunpack.c.l.b16 %v661
          %v682 = vunpack.c.h.b16 %v661
          %v683 = vunpack.c.l.b16 %v662
          %v684 = vunpack.c.h.b16 %v662
          %v685 = vunpack.c.l.b16 %v663
          %v686 = vunpack.c.h.b16 %v663
          %v687 = vunpack.c.l.b16 %v664
          %v688 = vunpack.c.h.b16 %v664
          %v689 = vpack.c.b16 %v673, %v673
          %v690 = vpack.c.b16 %v674, %v674
          %v691 = vpack.c.b16 %v675, %v675
          %v692 = vpack.c.b16 %v676, %v676
          %v693 = vpack.c.b16 %v677, %v677
          %v694 = vpack.c.b16 %v678, %v678
          %v695 = vpack.c.b16 %v679, %v679
          %v696 = vpack.c.b16 %v680, %v680
          %v697 = vpack.c.b16 %v681, %v681
          %v698 = vpack.c.b16 %v682, %v682
          %v699 = vpack.c.b16 %v683, %v683
          %v700 = vpack.c.b16 %v684, %v684
          %v701 = vpack.c.b16 %v685, %v685
          %v702 = vpack.c.b16 %v686, %v686
          %v703 = vpack.c.b16 %v687, %v687
          %v704 = vpack.c.b16 %v688, %v688
          %721 = vst [vmem:[#allocation2] sm:$0xf] %v689
          %722 = vst [vmem:[#allocation2 + $0x4] sm:$0xf] %v690
          %723 = vst [vmem:[#allocation2 + $0x8] sm:$0xf] %v691
          %724 = vst [vmem:[#allocation2 + $0xc] sm:$0xf] %v692
          %725 = vst [vmem:[#allocation2 + $0x10] sm:$0xf] %v693
          %726 = vst [vmem:[#allocation2 + $0x14] sm:$0xf] %v694
          %727 = vst [vmem:[#allocation2 + $0x18] sm:$0xf] %v695
          %728 = vst [vmem:[#allocation2 + $0x1c] sm:$0xf] %v696
          %729 = vst [vmem:[#allocation2 + $0x20] sm:$0xf] %v697
          %730 = vst [vmem:[#allocation2 + $0x24] sm:$0xf] %v698
          %731 = vst [vmem:[#allocation2 + $0x28] sm:$0xf] %v699
          %732 = vst [vmem:[#allocation2 + $0x2c] sm:$0xf] %v700
          %733 = vst [vmem:[#allocation2 + $0x30] sm:$0xf] %v701
          %734 = vst [vmem:[#allocation2 + $0x34] sm:$0xf] %v702
          %735 = vst [vmem:[#allocation2 + $0x38] sm:$0xf] %v703
          %736 = vst [vmem:[#allocation2 + $0x3c] sm:$0xf] %v704
          %vm737 = vcmask 7168
          %738 = vst.msk [vmem:[#allocation3] sm:$0xff] %vm737, -inf
          %739 = vst.msk [vmem:[#allocation3 + $0x8] sm:$0xff] %vm737, -inf
          %740 = vst.msk [vmem:[#allocation3 + $0x10] sm:$0xff] %vm737, -inf
          %741 = vst.msk [vmem:[#allocation3 + $0x18] sm:$0xff] %vm737, -inf
          %742 = vst.msk [vmem:[#allocation3 + $0x20] sm:$0xff] %vm737, -inf
          %743 = vst.msk [vmem:[#allocation3 + $0x28] sm:$0xff] %vm737, -inf
          %744 = vst.msk [vmem:[#allocation3 + $0x30] sm:$0xff] %vm737, -inf
          %745 = vst.msk [vmem:[#allocation3 + $0x38] sm:$0xff] %vm737, -inf
          %746 = vst.msk [vmem:[#allocation3 + $0x40] sm:$0xff] %vm737, -inf
          %747 = vst.msk [vmem:[#allocation3 + $0x48] sm:$0xff] %vm737, -inf
          %748 = vst.msk [vmem:[#allocation3 + $0x50] sm:$0xff] %vm737, -inf
          %749 = vst.msk [vmem:[#allocation3 + $0x58] sm:$0xff] %vm737, -inf
          %750 = vst.msk [vmem:[#allocation3 + $0x60] sm:$0xff] %vm737, -inf
          %751 = vst.msk [vmem:[#allocation3 + $0x68] sm:$0xff] %vm737, -inf
          %752 = vst.msk [vmem:[#allocation3 + $0x70] sm:$0xff] %vm737, -inf
          %753 = vst.msk [vmem:[#allocation3 + $0x78] sm:$0xff] %vm737, -inf
          %754 = vst.msk [vmem:[#allocation4] sm:$0xff] %vm737, 0.0
          %755 = vst.msk [vmem:[#allocation4 + $0x8] sm:$0xff] %vm737, 0.0
          %756 = vst.msk [vmem:[#allocation4 + $0x10] sm:$0xff] %vm737, 0.0
          %757 = vst.msk [vmem:[#allocation4 + $0x18] sm:$0xff] %vm737, 0.0
          %758 = vst.msk [vmem:[#allocation4 + $0x20] sm:$0xff] %vm737, 0.0
          %759 = vst.msk [vmem:[#allocation4 + $0x28] sm:$0xff] %vm737, 0.0
          %760 = vst.msk [vmem:[#allocation4 + $0x30] sm:$0xff] %vm737, 0.0
          %761 = vst.msk [vmem:[#allocation4 + $0x38] sm:$0xff] %vm737, 0.0
          %762 = vst.msk [vmem:[#allocation4 + $0x40] sm:$0xff] %vm737, 0.0
          %763 = vst.msk [vmem:[#allocation4 + $0x48] sm:$0xff] %vm737, 0.0
          %764 = vst.msk [vmem:[#allocation4 + $0x50] sm:$0xff] %vm737, 0.0
          %765 = vst.msk [vmem:[#allocation4 + $0x58] sm:$0xff] %vm737, 0.0
          %766 = vst.msk [vmem:[#allocation4 + $0x60] sm:$0xff] %vm737, 0.0
          %767 = vst.msk [vmem:[#allocation4 + $0x68] sm:$0xff] %vm737, 0.0
          %768 = vst.msk [vmem:[#allocation4 + $0x70] sm:$0xff] %vm737, 0.0
          %769 = vst.msk [vmem:[#allocation4 + $0x78] sm:$0xff] %vm737, 0.0
          %770 = vst [vmem:[#allocation5] sm:$0xff] 0.0
          %771 = vst [vmem:[#allocation5 + $0x8] sm:$0xff] 0.0
          %772 = vst [vmem:[#allocation5 + $0x10] sm:$0xff] 0.0
          %773 = vst [vmem:[#allocation5 + $0x18] sm:$0xff] 0.0
          %774 = vst [vmem:[#allocation5 + $0x20] sm:$0xff] 0.0
          %775 = vst [vmem:[#allocation5 + $0x28] sm:$0xff] 0.0
          %776 = vst [vmem:[#allocation5 + $0x30] sm:$0xff] 0.0
          %777 = vst [vmem:[#allocation5 + $0x38] sm:$0xff] 0.0
          %778 = vst [vmem:[#allocation5 + $0x40] sm:$0xff] 0.0
          %779 = vst [vmem:[#allocation5 + $0x48] sm:$0xff] 0.0
          %780 = vst [vmem:[#allocation5 + $0x50] sm:$0xff] 0.0
          %781 = vst [vmem:[#allocation5 + $0x58] sm:$0xff] 0.0
          %782 = vst [vmem:[#allocation5 + $0x60] sm:$0xff] 0.0
          %783 = vst [vmem:[#allocation5 + $0x68] sm:$0xff] 0.0
          %784 = vst [vmem:[#allocation5 + $0x70] sm:$0xff] 0.0
          %785 = vst [vmem:[#allocation5 + $0x78] sm:$0xff] 0.0
        $region76: #{tpu_custom_call.1} parent=47 // pred_fallthru
          _
        %v786 = vld [vmem:[%s372] sm:$0xf]
        %v787 = vld [vmem:[%s372 + $0x4] sm:$0xf]
        %v788 = vld [vmem:[%s372 + $0x8] sm:$0xf]
        %v789 = vld [vmem:[%s372 + $0xc] sm:$0xf]
        %v790 = vld [vmem:[%s372 + $0x10] sm:$0xf]
        %v791 = vld [vmem:[%s372 + $0x14] sm:$0xf]
        %v792 = vld [vmem:[%s372 + $0x18] sm:$0xf]
        %v793 = vld [vmem:[%s372 + $0x1c] sm:$0xf]
        %v794 = vld [vmem:[%s372 + $0x20] sm:$0xf]
        %v795 = vld [vmem:[%s372 + $0x24] sm:$0xf]
        %v796 = vld [vmem:[%s372 + $0x28] sm:$0xf]
        %v797 = vld [vmem:[%s372 + $0x2c] sm:$0xf]
        %v798 = vld [vmem:[%s372 + $0x30] sm:$0xf]
        %v799 = vld [vmem:[%s372 + $0x34] sm:$0xf]
        %v800 = vld [vmem:[%s372 + $0x38] sm:$0xf]
        %v801 = vld [vmem:[%s372 + $0x3c] sm:$0xf]
        %v802 = vld [vmem:[#allocation12] sm:$0xf]
        %v803 = vld [vmem:[#allocation12 + $0x4] sm:$0xf]
        %v804 = vld [vmem:[#allocation12 + $0x8] sm:$0xf]
        %v805 = vld [vmem:[#allocation12 + $0xc] sm:$0xf]
        %v806 = vld [vmem:[#allocation12 + $0x10] sm:$0xf]
        %v807 = vld [vmem:[#allocation12 + $0x14] sm:$0xf]
        %v808 = vld [vmem:[#allocation12 + $0x18] sm:$0xf]
        %v809 = vld [vmem:[#allocation12 + $0x1c] sm:$0xf]
        %v810 = vld [vmem:[#allocation12 + $0x20] sm:$0xf]
        %v811 = vld [vmem:[#allocation12 + $0x24] sm:$0xf]
        %v812 = vld [vmem:[#allocation12 + $0x28] sm:$0xf]
        %v813 = vld [vmem:[#allocation12 + $0x2c] sm:$0xf]
        %v814 = vld [vmem:[#allocation12 + $0x30] sm:$0xf]
        %v815 = vld [vmem:[#allocation12 + $0x34] sm:$0xf]
        %v816 = vld [vmem:[#allocation12 + $0x38] sm:$0xf]
        %v817 = vld [vmem:[#allocation12 + $0x3c] sm:$0xf]
        %v834 = vunpack.c.l.b16 %v786
        %v835 = vunpack.c.l.b16 %v787
        %v836 = vunpack.c.l.b16 %v788
        %v837 = vunpack.c.l.b16 %v789
        %v838 = vunpack.c.l.b16 %v790
        %v839 = vunpack.c.l.b16 %v791
        %v840 = vunpack.c.l.b16 %v792
        %v841 = vunpack.c.l.b16 %v793
        %v842 = vunpack.c.l.b16 %v794
        %v843 = vunpack.c.l.b16 %v795
        %v844 = vunpack.c.l.b16 %v796
        %v845 = vunpack.c.l.b16 %v797
        %v846 = vunpack.c.l.b16 %v798
        %v847 = vunpack.c.l.b16 %v799
        %v848 = vunpack.c.l.b16 %v800
        %v849 = vunpack.c.l.b16 %v801
        %v850 = vpack.c.b16 %v835, %v834
        %v851 = vpack.c.b16 %v837, %v836
        %v852 = vpack.c.b16 %v839, %v838
        %v853 = vpack.c.b16 %v841, %v840
        %v854 = vpack.c.b16 %v843, %v842
        %v855 = vpack.c.b16 %v845, %v844
        %v856 = vpack.c.b16 %v847, %v846
        %v857 = vpack.c.b16 %v849, %v848
        %v882 = vunpack.c.l.b16 %v802
        %v883 = vunpack.c.l.b16 %v803
        %v884 = vunpack.c.l.b16 %v804
        %v885 = vunpack.c.l.b16 %v805
        %v886 = vunpack.c.l.b16 %v806
        %v887 = vunpack.c.l.b16 %v807
        %v888 = vunpack.c.l.b16 %v808
        %v889 = vunpack.c.l.b16 %v809
        %v890 = vunpack.c.l.b16 %v810
        %v891 = vunpack.c.l.b16 %v811
        %v892 = vunpack.c.l.b16 %v812
        %v893 = vunpack.c.l.b16 %v813
        %v894 = vunpack.c.l.b16 %v814
        %v895 = vunpack.c.l.b16 %v815
        %v896 = vunpack.c.l.b16 %v816
        %v897 = vunpack.c.l.b16 %v817
        %v898 = vpack.c.b16 %v883, %v882
        %v899 = vpack.c.b16 %v885, %v884
        %v900 = vpack.c.b16 %v887, %v886
        %v901 = vpack.c.b16 %v889, %v888
        %v902 = vpack.c.b16 %v891, %v890
        %v903 = vpack.c.b16 %v893, %v892
        %v904 = vpack.c.b16 %v895, %v894
        %v905 = vpack.c.b16 %v897, %v896
        %914 = vmatprep.subr.bf16.mxu0 0
        %915 = vmatpush1.bf16.msra.mxu0 %v905
        %916 = vmatprep.subr.bf16.mxu0 0
        %917 = vmatpush1.bf16.msra.mxu0 %v904
        %918 = vmatprep.subr.bf16.mxu0 0
        %919 = vmatpush1.bf16.msra.mxu0 %v903
        %920 = vmatprep.subr.bf16.mxu0 0
        %921 = vmatpush1.bf16.msra.mxu0 %v902
        %922 = vmatprep.subr.bf16.mxu0 0
        %923 = vmatpush1.bf16.msra.mxu0 %v901
        %924 = vmatprep.subr.bf16.mxu0 0
        %925 = vmatpush1.bf16.msra.mxu0 %v900
        %926 = vmatprep.subr.bf16.mxu0 0
        %927 = vmatpush1.bf16.msra.mxu0 %v899
        %928 = vmatprep.subr.bf16.mxu0 0
        %929 = vmatpush1.bf16.msra.mxu0 %v898
        %930 = vmatprep.subr.bf16.mxu0 0
        %931 = vmatpush2.bf16.msra.mxu0 0
        %932 = vmatprep.subr.bf16.mxu0 0
        %933 = vmatpush2.bf16.msra.mxu0 0
        %934 = vmatprep.subr.bf16.mxu0 0
        %935 = vmatpush2.bf16.msra.mxu0 0
        %936 = vmatprep.subr.bf16.mxu0 0
        %937 = vmatpush2.bf16.msra.mxu0 0
        %938 = vmatprep.subr.bf16.mxu0 0
        %939 = vmatpush2.bf16.msra.mxu0 0
        %940 = vmatprep.subr.bf16.mxu0 0
        %941 = vmatpush2.bf16.msra.mxu0 0
        %942 = vmatprep.subr.bf16.mxu0 0
        %943 = vmatpush2.bf16.msra.mxu0 0
        %944 = vmatprep.subr.bf16.mxu0 0
        %945 = vmatpush2.bf16.msra.mxu0 0
        %946 = vmatprep.mubr.bf16.mxu0 0
        %947 = vmatmul.mubr.bf16.gmra.mxu0 %v850
        %v948 = vpop.f32.mrf.mxu0
        %v949 = vadd.f32 0.0, %v948
        %v950 = vpop.f32.mrf.mxu0
        %v951 = vpop.f32.mrf.mxu0
        %v952 = vadd.f32 0.0, %v951
        %v953 = vpop.f32.mrf.mxu0
        %954 = vmatprep.mubr.bf16.mxu0 0
        %955 = vmatmul.mubr.bf16.gmra.mxu0 %v851
        %v956 = vpop.f32.mrf.mxu0
        %v957 = vadd.f32 0.0, %v956
        %v958 = vpop.f32.mrf.mxu0
        %v959 = vpop.f32.mrf.mxu0
        %v960 = vadd.f32 0.0, %v959
        %v961 = vpop.f32.mrf.mxu0
        %962 = vmatprep.mubr.bf16.mxu0 0
        %963 = vmatmul.mubr.bf16.gmra.mxu0 %v852
        %v964 = vpop.f32.mrf.mxu0
        %v965 = vadd.f32 0.0, %v964
        %v966 = vpop.f32.mrf.mxu0
        %v967 = vpop.f32.mrf.mxu0
        %v968 = vadd.f32 0.0, %v967
        %v969 = vpop.f32.mrf.mxu0
        %970 = vmatprep.mubr.bf16.mxu0 0
        %971 = vmatmul.mubr.bf16.gmra.mxu0 %v853
        %v972 = vpop.f32.mrf.mxu0
        %v973 = vadd.f32 0.0, %v972
        %v974 = vpop.f32.mrf.mxu0
        %v975 = vpop.f32.mrf.mxu0
        %v976 = vadd.f32 0.0, %v975
        %v977 = vpop.f32.mrf.mxu0
        %978 = vmatprep.mubr.bf16.mxu0 0
        %979 = vmatmul.mubr.bf16.gmra.mxu0 %v854
        %v980 = vpop.f32.mrf.mxu0
        %v981 = vadd.f32 0.0, %v980
        %v982 = vpop.f32.mrf.mxu0
        %v983 = vpop.f32.mrf.mxu0
        %v984 = vadd.f32 0.0, %v983
        %v985 = vpop.f32.mrf.mxu0
        %986 = vmatprep.mubr.bf16.mxu0 0
        %987 = vmatmul.mubr.bf16.gmra.mxu0 %v855
        %v988 = vpop.f32.mrf.mxu0
        %v989 = vadd.f32 0.0, %v988
        %v990 = vpop.f32.mrf.mxu0
        %v991 = vpop.f32.mrf.mxu0
        %v992 = vadd.f32 0.0, %v991
        %v993 = vpop.f32.mrf.mxu0
        %994 = vmatprep.mubr.bf16.mxu0 0
        %995 = vmatmul.mubr.bf16.gmra.mxu0 %v856
        %v996 = vpop.f32.mrf.mxu0
        %v997 = vadd.f32 0.0, %v996
        %v998 = vpop.f32.mrf.mxu0
        %v999 = vpop.f32.mrf.mxu0
        %v1000 = vadd.f32 0.0, %v999
        %v1001 = vpop.f32.mrf.mxu0
        %1002 = vmatprep.mubr.bf16.mxu0 0
        %1003 = vmatmul.mubr.bf16.gmra.mxu0 %v857
        %v1004 = vpop.f32.mrf.mxu0
        %v1005 = vadd.f32 0.0, %v1004
        %v1006 = vpop.f32.mrf.mxu0
        %v1007 = vpop.f32.mrf.mxu0
        %v1008 = vadd.f32 0.0, %v1007
        %v1009 = vpop.f32.mrf.mxu0
        %1010 = vdwg.mxu0
        %v1011 = vpack.c.bf16 %v952, %v949
        %v1012 = vpack.c.bf16 %v960, %v957
        %v1013 = vpack.c.bf16 %v968, %v965
        %v1014 = vpack.c.bf16 %v976, %v973
        %v1015 = vpack.c.bf16 %v984, %v981
        %v1016 = vpack.c.bf16 %v992, %v989
        %v1017 = vpack.c.bf16 %v1000, %v997
        %v1018 = vpack.c.bf16 %v1008, %v1005
        %v1019 = vld [vmem:[#allocation14] sm:$0xf]
        %v1020 = vld [vmem:[#allocation14 + $0x4] sm:$0xf]
        %v1021 = vld [vmem:[#allocation14 + $0x8] sm:$0xf]
        %v1022 = vld [vmem:[#allocation14 + $0xc] sm:$0xf]
        %v1023 = vld [vmem:[#allocation14 + $0x10] sm:$0xf]
        %v1024 = vld [vmem:[#allocation14 + $0x14] sm:$0xf]
        %v1025 = vld [vmem:[#allocation14 + $0x18] sm:$0xf]
        %v1026 = vld [vmem:[#allocation14 + $0x1c] sm:$0xf]
        %v1027 = vld [vmem:[#allocation14 + $0x20] sm:$0xf]
        %v1028 = vld [vmem:[#allocation14 + $0x24] sm:$0xf]
        %v1029 = vld [vmem:[#allocation14 + $0x28] sm:$0xf]
        %v1030 = vld [vmem:[#allocation14 + $0x2c] sm:$0xf]
        %v1031 = vld [vmem:[#allocation14 + $0x30] sm:$0xf]
        %v1032 = vld [vmem:[#allocation14 + $0x34] sm:$0xf]
        %v1033 = vld [vmem:[#allocation14 + $0x38] sm:$0xf]
        %v1034 = vld [vmem:[#allocation14 + $0x3c] sm:$0xf]
        %v1051 = vunpack.c.l.b16 %v1019
        %v1052 = vunpack.c.l.b16 %v1020
        %v1053 = vunpack.c.l.b16 %v1021
        %v1054 = vunpack.c.l.b16 %v1022
        %v1055 = vunpack.c.l.b16 %v1023
        %v1056 = vunpack.c.l.b16 %v1024
        %v1057 = vunpack.c.l.b16 %v1025
        %v1058 = vunpack.c.l.b16 %v1026
        %v1059 = vunpack.c.l.b16 %v1027
        %v1060 = vunpack.c.l.b16 %v1028
        %v1061 = vunpack.c.l.b16 %v1029
        %v1062 = vunpack.c.l.b16 %v1030
        %v1063 = vunpack.c.l.b16 %v1031
        %v1064 = vunpack.c.l.b16 %v1032
        %v1065 = vunpack.c.l.b16 %v1033
        %v1066 = vunpack.c.l.b16 %v1034
        %v1067 = vpack.c.b16 %v1052, %v1051
        %v1068 = vpack.c.b16 %v1054, %v1053
        %v1069 = vpack.c.b16 %v1056, %v1055
        %v1070 = vpack.c.b16 %v1058, %v1057
        %v1071 = vpack.c.b16 %v1060, %v1059
        %v1072 = vpack.c.b16 %v1062, %v1061
        %v1073 = vpack.c.b16 %v1064, %v1063
        %v1074 = vpack.c.b16 %v1066, %v1065
        %1083 = vmatprep.subr.bf16.mxu0 0
        %1084 = vmatpush1.bf16.msra.mxu0 %v1074
        %1085 = vmatprep.subr.bf16.mxu0 0
        %1086 = vmatpush1.bf16.msra.mxu0 %v1073
        %1087 = vmatprep.subr.bf16.mxu0 0
        %1088 = vmatpush1.bf16.msra.mxu0 %v1072
        %1089 = vmatprep.subr.bf16.mxu0 0
        %1090 = vmatpush1.bf16.msra.mxu0 %v1071
        %1091 = vmatprep.subr.bf16.mxu0 0
        %1092 = vmatpush1.bf16.msra.mxu0 %v1070
        %1093 = vmatprep.subr.bf16.mxu0 0
        %1094 = vmatpush1.bf16.msra.mxu0 %v1069
        %1095 = vmatprep.subr.bf16.mxu0 0
        %1096 = vmatpush1.bf16.msra.mxu0 %v1068
        %1097 = vmatprep.subr.bf16.mxu0 0
        %1098 = vmatpush1.bf16.msra.mxu0 %v1067
        %1099 = vmatprep.subr.bf16.mxu0 0
        %1100 = vmatpush2.bf16.msra.mxu0 0
        %1101 = vmatprep.subr.bf16.mxu0 0
        %1102 = vmatpush2.bf16.msra.mxu0 0
        %1103 = vmatprep.subr.bf16.mxu0 0
        %1104 = vmatpush2.bf16.msra.mxu0 0
        %1105 = vmatprep.subr.bf16.mxu0 0
        %1106 = vmatpush2.bf16.msra.mxu0 0
        %1107 = vmatprep.subr.bf16.mxu0 0
        %1108 = vmatpush2.bf16.msra.mxu0 0
        %1109 = vmatprep.subr.bf16.mxu0 0
        %1110 = vmatpush2.bf16.msra.mxu0 0
        %1111 = vmatprep.subr.bf16.mxu0 0
        %1112 = vmatpush2.bf16.msra.mxu0 0
        %1113 = vmatprep.subr.bf16.mxu0 0
        %1114 = vmatpush2.bf16.msra.mxu0 0
        %1115 = vmatprep.mubr.bf16.mxu0 0
        %1116 = vmatmul.mubr.bf16.gmra.mxu0 %v850
        %v1117 = vpop.f32.mrf.mxu0
        %v1118 = vadd.f32 0.0, %v1117
        %v1119 = vpop.f32.mrf.mxu0
        %v1120 = vpop.f32.mrf.mxu0
        %v1121 = vadd.f32 0.0, %v1120
        %v1122 = vpop.f32.mrf.mxu0
        %1123 = vmatprep.mubr.bf16.mxu0 0
        %1124 = vmatmul.mubr.bf16.gmra.mxu0 %v851
        %v1125 = vpop.f32.mrf.mxu0
        %v1126 = vadd.f32 0.0, %v1125
        %v1127 = vpop.f32.mrf.mxu0
        %v1128 = vpop.f32.mrf.mxu0
        %v1129 = vadd.f32 0.0, %v1128
        %v1130 = vpop.f32.mrf.mxu0
        %1131 = vmatprep.mubr.bf16.mxu0 0
        %1132 = vmatmul.mubr.bf16.gmra.mxu0 %v852
        %v1133 = vpop.f32.mrf.mxu0
        %v1134 = vadd.f32 0.0, %v1133
        %v1135 = vpop.f32.mrf.mxu0
        %v1136 = vpop.f32.mrf.mxu0
        %v1137 = vadd.f32 0.0, %v1136
        %v1138 = vpop.f32.mrf.mxu0
        %1139 = vmatprep.mubr.bf16.mxu0 0
        %1140 = vmatmul.mubr.bf16.gmra.mxu0 %v853
        %v1141 = vpop.f32.mrf.mxu0
        %v1142 = vadd.f32 0.0, %v1141
        %v1143 = vpop.f32.mrf.mxu0
        %v1144 = vpop.f32.mrf.mxu0
        %v1145 = vadd.f32 0.0, %v1144
        %v1146 = vpop.f32.mrf.mxu0
        %1147 = vmatprep.mubr.bf16.mxu0 0
        %1148 = vmatmul.mubr.bf16.gmra.mxu0 %v854
        %v1149 = vpop.f32.mrf.mxu0
        %v1150 = vadd.f32 0.0, %v1149
        %v1151 = vpop.f32.mrf.mxu0
        %v1152 = vpop.f32.mrf.mxu0
        %v1153 = vadd.f32 0.0, %v1152
        %v1154 = vpop.f32.mrf.mxu0
        %1155 = vmatprep.mubr.bf16.mxu0 0
        %1156 = vmatmul.mubr.bf16.gmra.mxu0 %v855
        %v1157 = vpop.f32.mrf.mxu0
        %v1158 = vadd.f32 0.0, %v1157
        %v1159 = vpop.f32.mrf.mxu0
        %v1160 = vpop.f32.mrf.mxu0
        %v1161 = vadd.f32 0.0, %v1160
        %v1162 = vpop.f32.mrf.mxu0
        %1163 = vmatprep.mubr.bf16.mxu0 0
        %1164 = vmatmul.mubr.bf16.gmra.mxu0 %v856
        %v1165 = vpop.f32.mrf.mxu0
        %v1166 = vadd.f32 0.0, %v1165
        %v1167 = vpop.f32.mrf.mxu0
        %v1168 = vpop.f32.mrf.mxu0
        %v1169 = vadd.f32 0.0, %v1168
        %v1170 = vpop.f32.mrf.mxu0
        %1171 = vmatprep.mubr.bf16.mxu0 0
        %1172 = vmatmul.mubr.bf16.gmra.mxu0 %v857
        %v1173 = vpop.f32.mrf.mxu0
        %v1174 = vadd.f32 0.0, %v1173
        %v1175 = vpop.f32.mrf.mxu0
        %v1176 = vpop.f32.mrf.mxu0
        %v1177 = vadd.f32 0.0, %v1176
        %v1178 = vpop.f32.mrf.mxu0
        %1179 = vdwg.mxu0
        %v1180 = vpack.c.bf16 %v1121, %v1118
        %v1181 = vpack.c.bf16 %v1129, %v1126
        %v1182 = vpack.c.bf16 %v1137, %v1134
        %v1183 = vpack.c.bf16 %v1145, %v1142
        %v1184 = vpack.c.bf16 %v1153, %v1150
        %v1185 = vpack.c.bf16 %v1161, %v1158
        %v1186 = vpack.c.bf16 %v1169, %v1166
        %v1187 = vpack.c.bf16 %v1177, %v1174
        %v1188 = vld [vmem:[#allocation2] sm:$0xf]
        %v1189 = vld [vmem:[#allocation2 + $0x4] sm:$0xf]
        %v1190 = vld [vmem:[#allocation2 + $0x8] sm:$0xf]
        %v1191 = vld [vmem:[#allocation2 + $0xc] sm:$0xf]
        %v1192 = vld [vmem:[#allocation2 + $0x10] sm:$0xf]
        %v1193 = vld [vmem:[#allocation2 + $0x14] sm:$0xf]
        %v1194 = vld [vmem:[#allocation2 + $0x18] sm:$0xf]
        %v1195 = vld [vmem:[#allocation2 + $0x1c] sm:$0xf]
        %v1196 = vld [vmem:[#allocation2 + $0x20] sm:$0xf]
        %v1197 = vld [vmem:[#allocation2 + $0x24] sm:$0xf]
        %v1198 = vld [vmem:[#allocation2 + $0x28] sm:$0xf]
        %v1199 = vld [vmem:[#allocation2 + $0x2c] sm:$0xf]
        %v1200 = vld [vmem:[#allocation2 + $0x30] sm:$0xf]
        %v1201 = vld [vmem:[#allocation2 + $0x34] sm:$0xf]
        %v1202 = vld [vmem:[#allocation2 + $0x38] sm:$0xf]
        %v1203 = vld [vmem:[#allocation2 + $0x3c] sm:$0xf]
        %v1220 = vunpack.c.l.b16 %v1188
        %v1221 = vunpack.c.l.b16 %v1189
        %v1222 = vunpack.c.l.b16 %v1190
        %v1223 = vunpack.c.l.b16 %v1191
        %v1224 = vunpack.c.l.b16 %v1192
        %v1225 = vunpack.c.l.b16 %v1193
        %v1226 = vunpack.c.l.b16 %v1194
        %v1227 = vunpack.c.l.b16 %v1195
        %v1228 = vunpack.c.l.b16 %v1196
        %v1229 = vunpack.c.l.b16 %v1197
        %v1230 = vunpack.c.l.b16 %v1198
        %v1231 = vunpack.c.l.b16 %v1199
        %v1232 = vunpack.c.l.b16 %v1200
        %v1233 = vunpack.c.l.b16 %v1201
        %v1234 = vunpack.c.l.b16 %v1202
        %v1235 = vunpack.c.l.b16 %v1203
        %v1236 = vpack.c.b16 %v1221, %v1220
        %v1237 = vpack.c.b16 %v1223, %v1222
        %v1238 = vpack.c.b16 %v1225, %v1224
        %v1239 = vpack.c.b16 %v1227, %v1226
        %v1240 = vpack.c.b16 %v1229, %v1228
        %v1241 = vpack.c.b16 %v1231, %v1230
        %v1242 = vpack.c.b16 %v1233, %v1232
        %v1243 = vpack.c.b16 %v1235, %v1234
        %1252 = vmatprep.subr.bf16.mxu0 0
        %1253 = vmatpush1.bf16.xpose.msra.mxu0 %v1018
        %1254 = vmatprep.subr.bf16.mxu0 0
        %1255 = vmatpush1.bf16.xpose.msra.mxu0 %v1017
        %1256 = vmatprep.subr.bf16.mxu0 0
        %1257 = vmatpush1.bf16.xpose.msra.mxu0 %v1016
        %1258 = vmatprep.subr.bf16.mxu0 0
        %1259 = vmatpush1.bf16.xpose.msra.mxu0 %v1015
        %1260 = vmatprep.subr.bf16.mxu0 0
        %1261 = vmatpush1.bf16.xpose.msra.mxu0 %v1014
        %1262 = vmatprep.subr.bf16.mxu0 0
        %1263 = vmatpush1.bf16.xpose.msra.mxu0 %v1013
        %1264 = vmatprep.subr.bf16.mxu0 0
        %1265 = vmatpush1.bf16.xpose.msra.mxu0 %v1012
        %1266 = vmatprep.subr.bf16.mxu0 0
        %1267 = vmatpush1.bf16.xpose.msra.mxu0 %v1011
        %1268 = vmatprep.subr.bf16.mxu0 0
        %1269 = vmatpush2.bf16.xpose.msra.mxu0 0
        %1270 = vmatprep.subr.bf16.mxu0 0
        %1271 = vmatpush2.bf16.xpose.msra.mxu0 0
        %1272 = vmatprep.subr.bf16.mxu0 0
        %1273 = vmatpush2.bf16.xpose.msra.mxu0 0
        %1274 = vmatprep.subr.bf16.mxu0 0
        %1275 = vmatpush2.bf16.xpose.msra.mxu0 0
        %1276 = vmatprep.subr.bf16.mxu0 0
        %1277 = vmatpush2.bf16.xpose.msra.mxu0 0
        %1278 = vmatprep.subr.bf16.mxu0 0
        %1279 = vmatpush2.bf16.xpose.msra.mxu0 0
        %1280 = vmatprep.subr.bf16.mxu0 0
        %1281 = vmatpush2.bf16.xpose.msra.mxu0 0
        %1282 = vmatprep.subr.bf16.mxu0 0
        %1283 = vmatpush2.bf16.xpose.msra.mxu0 0
        %1284 = vmatprep.mubr.bf16.mxu0 0
        %1285 = vmatmul.mubr.bf16.gmra.mxu0 %v1236
        %v1286 = vpop.f32.mrf.mxu0
        %v1287 = vadd.f32 0.0, %v1286
        %v1288 = vpop.f32.mrf.mxu0
        %v1289 = vpop.f32.mrf.mxu0
        %v1290 = vadd.f32 0.0, %v1289
        %v1291 = vpop.f32.mrf.mxu0
        %1292 = vmatprep.mubr.bf16.mxu0 0
        %1293 = vmatmul.mubr.bf16.gmra.mxu0 %v1237
        %v1294 = vpop.f32.mrf.mxu0
        %v1295 = vadd.f32 0.0, %v1294
        %v1296 = vpop.f32.mrf.mxu0
        %v1297 = vpop.f32.mrf.mxu0
        %v1298 = vadd.f32 0.0, %v1297
        %v1299 = vpop.f32.mrf.mxu0
        %1300 = vmatprep.mubr.bf16.mxu0 0
        %1301 = vmatmul.mubr.bf16.gmra.mxu0 %v1238
        %v1302 = vpop.f32.mrf.mxu0
        %v1303 = vadd.f32 0.0, %v1302
        %v1304 = vpop.f32.mrf.mxu0
        %v1305 = vpop.f32.mrf.mxu0
        %v1306 = vadd.f32 0.0, %v1305
        %v1307 = vpop.f32.mrf.mxu0
        %1308 = vmatprep.mubr.bf16.mxu0 0
        %1309 = vmatmul.mubr.bf16.gmra.mxu0 %v1239
        %v1310 = vpop.f32.mrf.mxu0
        %v1311 = vadd.f32 0.0, %v1310
        %v1312 = vpop.f32.mrf.mxu0
        %v1313 = vpop.f32.mrf.mxu0
        %v1314 = vadd.f32 0.0, %v1313
        %v1315 = vpop.f32.mrf.mxu0
        %1316 = vmatprep.mubr.bf16.mxu0 0
        %1317 = vmatmul.mubr.bf16.gmra.mxu0 %v1240
        %v1318 = vpop.f32.mrf.mxu0
        %v1319 = vadd.f32 0.0, %v1318
        %v1320 = vpop.f32.mrf.mxu0
        %v1321 = vpop.f32.mrf.mxu0
        %v1322 = vadd.f32 0.0, %v1321
        %v1323 = vpop.f32.mrf.mxu0
        %1324 = vmatprep.mubr.bf16.mxu0 0
        %1325 = vmatmul.mubr.bf16.gmra.mxu0 %v1241
        %v1326 = vpop.f32.mrf.mxu0
        %v1327 = vadd.f32 0.0, %v1326
        %v1328 = vpop.f32.mrf.mxu0
        %v1329 = vpop.f32.mrf.mxu0
        %v1330 = vadd.f32 0.0, %v1329
        %v1331 = vpop.f32.mrf.mxu0
        %1332 = vmatprep.mubr.bf16.mxu0 0
        %1333 = vmatmul.mubr.bf16.gmra.mxu0 %v1242
        %v1334 = vpop.f32.mrf.mxu0
        %v1335 = vadd.f32 0.0, %v1334
        %v1336 = vpop.f32.mrf.mxu0
        %v1337 = vpop.f32.mrf.mxu0
        %v1338 = vadd.f32 0.0, %v1337
        %v1339 = vpop.f32.mrf.mxu0
        %1340 = vmatprep.mubr.bf16.mxu0 0
        %1341 = vmatmul.mubr.bf16.gmra.mxu0 %v1243
        %v1342 = vpop.f32.mrf.mxu0
        %v1343 = vadd.f32 0.0, %v1342
        %v1344 = vpop.f32.mrf.mxu0
        %v1345 = vpop.f32.mrf.mxu0
        %v1346 = vadd.f32 0.0, %v1345
        %v1347 = vpop.f32.mrf.mxu0
        %1348 = vdwg.mxu0
        %v1349 = vld [vmem:[#allocation3] sm:$0xff]
        %v1350 = vld [vmem:[#allocation3 + $0x8] sm:$0xff]
        %v1351 = vld [vmem:[#allocation3 + $0x10] sm:$0xff]
        %v1352 = vld [vmem:[#allocation3 + $0x18] sm:$0xff]
        %v1353 = vld [vmem:[#allocation3 + $0x20] sm:$0xff]
        %v1354 = vld [vmem:[#allocation3 + $0x28] sm:$0xff]
        %v1355 = vld [vmem:[#allocation3 + $0x30] sm:$0xff]
        %v1356 = vld [vmem:[#allocation3 + $0x38] sm:$0xff]
        %v1357 = vld [vmem:[#allocation3 + $0x40] sm:$0xff]
        %v1358 = vld [vmem:[#allocation3 + $0x48] sm:$0xff]
        %v1359 = vld [vmem:[#allocation3 + $0x50] sm:$0xff]
        %v1360 = vld [vmem:[#allocation3 + $0x58] sm:$0xff]
        %v1361 = vld [vmem:[#allocation3 + $0x60] sm:$0xff]
        %v1362 = vld [vmem:[#allocation3 + $0x68] sm:$0xff]
        %v1363 = vld [vmem:[#allocation3 + $0x70] sm:$0xff]
        %v1364 = vld [vmem:[#allocation3 + $0x78] sm:$0xff]
        %1365 = vmax.xlane.f32.xlu0 %v1287
        %v1366 = vpop.xlane.xlu0 %1365
        %1367 = vmax.xlane.f32.xlu0 %v1290
        %v1368 = vpop.xlane.xlu0 %1367
        %1369 = vmax.xlane.f32.xlu0 %v1295
        %v1370 = vpop.xlane.xlu0 %1369
        %1371 = vmax.xlane.f32.xlu0 %v1298
        %v1372 = vpop.xlane.xlu0 %1371
        %1373 = vmax.xlane.f32.xlu0 %v1303
        %v1374 = vpop.xlane.xlu0 %1373
        %1375 = vmax.xlane.f32.xlu0 %v1306
        %v1376 = vpop.xlane.xlu0 %1375
        %1377 = vmax.xlane.f32.xlu0 %v1311
        %v1378 = vpop.xlane.xlu0 %1377
        %1379 = vmax.xlane.f32.xlu0 %v1314
        %v1380 = vpop.xlane.xlu0 %1379
        %1381 = vmax.xlane.f32.xlu0 %v1319
        %v1382 = vpop.xlane.xlu0 %1381
        %1383 = vmax.xlane.f32.xlu0 %v1322
        %v1384 = vpop.xlane.xlu0 %1383
        %1385 = vmax.xlane.f32.xlu0 %v1327
        %v1386 = vpop.xlane.xlu0 %1385
        %1387 = vmax.xlane.f32.xlu0 %v1330
        %v1388 = vpop.xlane.xlu0 %1387
        %1389 = vmax.xlane.f32.xlu0 %v1335
        %v1390 = vpop.xlane.xlu0 %1389
        %1391 = vmax.xlane.f32.xlu0 %v1338
        %v1392 = vpop.xlane.xlu0 %1391
        %1393 = vmax.xlane.f32.xlu0 %v1343
        %v1394 = vpop.xlane.xlu0 %1393
        %1395 = vmax.xlane.f32.xlu0 %v1346
        %v1396 = vpop.xlane.xlu0 %1395
        %v1397 = vmax.f32 %v1349, %v1366
        %v1398 = vmax.f32 %v1350, %v1368
        %v1399 = vmax.f32 %v1351, %v1370
        %v1400 = vmax.f32 %v1352, %v1372
        %v1401 = vmax.f32 %v1353, %v1374
        %v1402 = vmax.f32 %v1354, %v1376
        %v1403 = vmax.f32 %v1355, %v1378
        %v1404 = vmax.f32 %v1356, %v1380
        %v1405 = vmax.f32 %v1357, %v1382
        %v1406 = vmax.f32 %v1358, %v1384
        %v1407 = vmax.f32 %v1359, %v1386
        %v1408 = vmax.f32 %v1360, %v1388
        %v1409 = vmax.f32 %v1361, %v1390
        %v1410 = vmax.f32 %v1362, %v1392
        %v1411 = vmax.f32 %v1363, %v1394
        %v1412 = vmax.f32 %v1364, %v1396
        %v1413 = vsub.f32 %v1349, %v1397
        %v1414 = vsub.f32 %v1350, %v1398
        %v1415 = vsub.f32 %v1351, %v1399
        %v1416 = vsub.f32 %v1352, %v1400
        %v1417 = vsub.f32 %v1353, %v1401
        %v1418 = vsub.f32 %v1354, %v1402
        %v1419 = vsub.f32 %v1355, %v1403
        %v1420 = vsub.f32 %v1356, %v1404
        %v1421 = vsub.f32 %v1357, %v1405
        %v1422 = vsub.f32 %v1358, %v1406
        %v1423 = vsub.f32 %v1359, %v1407
        %v1424 = vsub.f32 %v1360, %v1408
        %v1425 = vsub.f32 %v1361, %v1409
        %v1426 = vsub.f32 %v1362, %v1410
        %v1427 = vsub.f32 %v1363, %v1411
        %v1428 = vsub.f32 %v1364, %v1412
        %v1429 = vmul.f32 %v1413, 1.442695
        %v1430 = vpow.pop %v1429
        %v1431 = vmul.f32 %v1414, 1.442695
        %v1432 = vpow.pop %v1431
        %v1433 = vmul.f32 %v1415, 1.442695
        %v1434 = vpow.pop %v1433
        %v1435 = vmul.f32 %v1416, 1.442695
        %v1436 = vpow.pop %v1435
        %v1437 = vmul.f32 %v1417, 1.442695
        %v1438 = vpow.pop %v1437
        %v1439 = vmul.f32 %v1418, 1.442695
        %v1440 = vpow.pop %v1439
        %v1441 = vmul.f32 %v1419, 1.442695
        %v1442 = vpow.pop %v1441
        %v1443 = vmul.f32 %v1420, 1.442695
        %v1444 = vpow.pop %v1443
        %v1445 = vmul.f32 %v1421, 1.442695
        %v1446 = vpow.pop %v1445
        %v1447 = vmul.f32 %v1422, 1.442695
        %v1448 = vpow.pop %v1447
        %v1449 = vmul.f32 %v1423, 1.442695
        %v1450 = vpow.pop %v1449
        %v1451 = vmul.f32 %v1424, 1.442695
        %v1452 = vpow.pop %v1451
        %v1453 = vmul.f32 %v1425, 1.442695
        %v1454 = vpow.pop %v1453
        %v1455 = vmul.f32 %v1426, 1.442695
        %v1456 = vpow.pop %v1455
        %v1457 = vmul.f32 %v1427, 1.442695
        %v1458 = vpow.pop %v1457
        %v1459 = vmul.f32 %v1428, 1.442695
        %v1460 = vpow.pop %v1459
        %1462 = vset.pattern.permute.xlu0 0
        %1463 = vperm.xlu0 %1462, %v1397
        %v1464 = vpop.permute.xlu0 %1463
        %1467 = vset.pattern.permute.xlu0 0
        %1468 = vperm.xlu0 %1467, %v1398
        %v1469 = vpop.permute.xlu0 %1468
        %1472 = vset.pattern.permute.xlu0 0
        %1473 = vperm.xlu0 %1472, %v1399
        %v1474 = vpop.permute.xlu0 %1473
        %1477 = vset.pattern.permute.xlu0 0
        %1478 = vperm.xlu0 %1477, %v1400
        %v1479 = vpop.permute.xlu0 %1478
        %1482 = vset.pattern.permute.xlu0 0
        %1483 = vperm.xlu0 %1482, %v1401
        %v1484 = vpop.permute.xlu0 %1483
        %1487 = vset.pattern.permute.xlu0 0
        %1488 = vperm.xlu0 %1487, %v1402
        %v1489 = vpop.permute.xlu0 %1488
        %1492 = vset.pattern.permute.xlu0 0
        %1493 = vperm.xlu0 %1492, %v1403
        %v1494 = vpop.permute.xlu0 %1493
        %1497 = vset.pattern.permute.xlu0 0
        %1498 = vperm.xlu0 %1497, %v1404
        %v1499 = vpop.permute.xlu0 %1498
        %1502 = vset.pattern.permute.xlu0 0
        %1503 = vperm.xlu0 %1502, %v1405
        %v1504 = vpop.permute.xlu0 %1503
        %1507 = vset.pattern.permute.xlu0 0
        %1508 = vperm.xlu0 %1507, %v1406
        %v1509 = vpop.permute.xlu0 %1508
        %1512 = vset.pattern.permute.xlu0 0
        %1513 = vperm.xlu0 %1512, %v1407
        %v1514 = vpop.permute.xlu0 %1513
        %1517 = vset.pattern.permute.xlu0 0
        %1518 = vperm.xlu0 %1517, %v1408
        %v1519 = vpop.permute.xlu0 %1518
        %1522 = vset.pattern.permute.xlu0 0
        %1523 = vperm.xlu0 %1522, %v1409
        %v1524 = vpop.permute.xlu0 %1523
        %1527 = vset.pattern.permute.xlu0 0
        %1528 = vperm.xlu0 %1527, %v1410
        %v1529 = vpop.permute.xlu0 %1528
        %1532 = vset.pattern.permute.xlu0 0
        %1533 = vperm.xlu0 %1532, %v1411
        %v1534 = vpop.permute.xlu0 %1533
        %1537 = vset.pattern.permute.xlu0 0
        %1538 = vperm.xlu0 %1537, %v1412
        %v1539 = vpop.permute.xlu0 %1538
        %v1541 = vsub.f32 %v1287, %v1464
        %v1542 = vsub.f32 %v1290, %v1469
        %v1543 = vsub.f32 %v1295, %v1474
        %v1544 = vsub.f32 %v1298, %v1479
        %v1545 = vsub.f32 %v1303, %v1484
        %v1546 = vsub.f32 %v1306, %v1489
        %v1547 = vsub.f32 %v1311, %v1494
        %v1548 = vsub.f32 %v1314, %v1499
        %v1549 = vsub.f32 %v1319, %v1504
        %v1550 = vsub.f32 %v1322, %v1509
        %v1551 = vsub.f32 %v1327, %v1514
        %v1552 = vsub.f32 %v1330, %v1519
        %v1553 = vsub.f32 %v1335, %v1524
        %v1554 = vsub.f32 %v1338, %v1529
        %v1555 = vsub.f32 %v1343, %v1534
        %v1556 = vsub.f32 %v1346, %v1539
        %v1557 = vmul.f32 %v1541, 1.442695
        %v1558 = vpow.pop %v1557
        %v1559 = vmul.f32 %v1542, 1.442695
        %v1560 = vpow.pop %v1559
        %v1561 = vmul.f32 %v1543, 1.442695
        %v1562 = vpow.pop %v1561
        %v1563 = vmul.f32 %v1544, 1.442695
        %v1564 = vpow.pop %v1563
        %v1565 = vmul.f32 %v1545, 1.442695
        %v1566 = vpow.pop %v1565
        %v1567 = vmul.f32 %v1546, 1.442695
        %v1568 = vpow.pop %v1567
        %v1569 = vmul.f32 %v1547, 1.442695
        %v1570 = vpow.pop %v1569
        %v1571 = vmul.f32 %v1548, 1.442695
        %v1572 = vpow.pop %v1571
        %v1573 = vmul.f32 %v1549, 1.442695
        %v1574 = vpow.pop %v1573
        %v1575 = vmul.f32 %v1550, 1.442695
        %v1576 = vpow.pop %v1575
        %v1577 = vmul.f32 %v1551, 1.442695
        %v1578 = vpow.pop %v1577
        %v1579 = vmul.f32 %v1552, 1.442695
        %v1580 = vpow.pop %v1579
        %v1581 = vmul.f32 %v1553, 1.442695
        %v1582 = vpow.pop %v1581
        %v1583 = vmul.f32 %v1554, 1.442695
        %v1584 = vpow.pop %v1583
        %v1585 = vmul.f32 %v1555, 1.442695
        %v1586 = vpow.pop %v1585
        %v1587 = vmul.f32 %v1556, 1.442695
        %v1588 = vpow.pop %v1587
        %v1589 = vld [vmem:[#allocation4] sm:$0xff]
        %v1590 = vld [vmem:[#allocation4 + $0x8] sm:$0xff]
        %v1591 = vld [vmem:[#allocation4 + $0x10] sm:$0xff]
        %v1592 = vld [vmem:[#allocation4 + $0x18] sm:$0xff]
        %v1593 = vld [vmem:[#allocation4 + $0x20] sm:$0xff]
        %v1594 = vld [vmem:[#allocation4 + $0x28] sm:$0xff]
        %v1595 = vld [vmem:[#allocation4 + $0x30] sm:$0xff]
        %v1596 = vld [vmem:[#allocation4 + $0x38] sm:$0xff]
        %v1597 = vld [vmem:[#allocation4 + $0x40] sm:$0xff]
        %v1598 = vld [vmem:[#allocation4 + $0x48] sm:$0xff]
        %v1599 = vld [vmem:[#allocation4 + $0x50] sm:$0xff]
        %v1600 = vld [vmem:[#allocation4 + $0x58] sm:$0xff]
        %v1601 = vld [vmem:[#allocation4 + $0x60] sm:$0xff]
        %v1602 = vld [vmem:[#allocation4 + $0x68] sm:$0xff]
        %v1603 = vld [vmem:[#allocation4 + $0x70] sm:$0xff]
        %v1604 = vld [vmem:[#allocation4 + $0x78] sm:$0xff]
        %v1605 = vmul.f32 %v1430, %v1589
        %v1606 = vmul.f32 %v1432, %v1590
        %v1607 = vmul.f32 %v1434, %v1591
        %v1608 = vmul.f32 %v1436, %v1592
        %v1609 = vmul.f32 %v1438, %v1593
        %v1610 = vmul.f32 %v1440, %v1594
        %v1611 = vmul.f32 %v1442, %v1595
        %v1612 = vmul.f32 %v1444, %v1596
        %v1613 = vmul.f32 %v1446, %v1597
        %v1614 = vmul.f32 %v1448, %v1598
        %v1615 = vmul.f32 %v1450, %v1599
        %v1616 = vmul.f32 %v1452, %v1600
        %v1617 = vmul.f32 %v1454, %v1601
        %v1618 = vmul.f32 %v1456, %v1602
        %v1619 = vmul.f32 %v1458, %v1603
        %v1620 = vmul.f32 %v1460, %v1604
        %1621 = vadd.xlane.f32.xlu0 %v1558
        %v1622 = vpop.xlane.xlu0 %1621
        %1623 = vadd.xlane.f32.xlu0 %v1560
        %v1624 = vpop.xlane.xlu0 %1623
        %1625 = vadd.xlane.f32.xlu0 %v1562
        %v1626 = vpop.xlane.xlu0 %1625
        %1627 = vadd.xlane.f32.xlu0 %v1564
        %v1628 = vpop.xlane.xlu0 %1627
        %1629 = vadd.xlane.f32.xlu0 %v1566
        %v1630 = vpop.xlane.xlu0 %1629
        %1631 = vadd.xlane.f32.xlu0 %v1568
        %v1632 = vpop.xlane.xlu0 %1631
        %1633 = vadd.xlane.f32.xlu0 %v1570
        %v1634 = vpop.xlane.xlu0 %1633
        %1635 = vadd.xlane.f32.xlu0 %v1572
        %v1636 = vpop.xlane.xlu0 %1635
        %1637 = vadd.xlane.f32.xlu0 %v1574
        %v1638 = vpop.xlane.xlu0 %1637
        %1639 = vadd.xlane.f32.xlu0 %v1576
        %v1640 = vpop.xlane.xlu0 %1639
        %1641 = vadd.xlane.f32.xlu0 %v1578
        %v1642 = vpop.xlane.xlu0 %1641
        %1643 = vadd.xlane.f32.xlu0 %v1580
        %v1644 = vpop.xlane.xlu0 %1643
        %1645 = vadd.xlane.f32.xlu0 %v1582
        %v1646 = vpop.xlane.xlu0 %1645
        %1647 = vadd.xlane.f32.xlu0 %v1584
        %v1648 = vpop.xlane.xlu0 %1647
        %1649 = vadd.xlane.f32.xlu0 %v1586
        %v1650 = vpop.xlane.xlu0 %1649
        %1651 = vadd.xlane.f32.xlu0 %v1588
        %v1652 = vpop.xlane.xlu0 %1651
        %v1653 = vadd.f32 %v1605, %v1622
        %v1654 = vadd.f32 %v1606, %v1624
        %v1655 = vadd.f32 %v1607, %v1626
        %v1656 = vadd.f32 %v1608, %v1628
        %v1657 = vadd.f32 %v1609, %v1630
        %v1658 = vadd.f32 %v1610, %v1632
        %v1659 = vadd.f32 %v1611, %v1634
        %v1660 = vadd.f32 %v1612, %v1636
        %v1661 = vadd.f32 %v1613, %v1638
        %v1662 = vadd.f32 %v1614, %v1640
        %v1663 = vadd.f32 %v1615, %v1642
        %v1664 = vadd.f32 %v1616, %v1644
        %v1665 = vadd.f32 %v1617, %v1646
        %v1666 = vadd.f32 %v1618, %v1648
        %v1667 = vadd.f32 %v1619, %v1650
        %v1668 = vadd.f32 %v1620, %v1652
        %vm1669 = vcmask 7168
        %1670 = vst.msk [vmem:[#allocation4] sm:$0xff] %vm1669, %v1653
        %1671 = vst.msk [vmem:[#allocation4 + $0x8] sm:$0xff] %vm1669, %v1654
        %1672 = vst.msk [vmem:[#allocation4 + $0x10] sm:$0xff] %vm1669, %v1655
        %1673 = vst.msk [vmem:[#allocation4 + $0x18] sm:$0xff] %vm1669, %v1656
        %1674 = vst.msk [vmem:[#allocation4 + $0x20] sm:$0xff] %vm1669, %v1657
        %1675 = vst.msk [vmem:[#allocation4 + $0x28] sm:$0xff] %vm1669, %v1658
        %1676 = vst.msk [vmem:[#allocation4 + $0x30] sm:$0xff] %vm1669, %v1659
        %1677 = vst.msk [vmem:[#allocation4 + $0x38] sm:$0xff] %vm1669, %v1660
        %1678 = vst.msk [vmem:[#allocation4 + $0x40] sm:$0xff] %vm1669, %v1661
        %1679 = vst.msk [vmem:[#allocation4 + $0x48] sm:$0xff] %vm1669, %v1662
        %1680 = vst.msk [vmem:[#allocation4 + $0x50] sm:$0xff] %vm1669, %v1663
        %1681 = vst.msk [vmem:[#allocation4 + $0x58] sm:$0xff] %vm1669, %v1664
        %1682 = vst.msk [vmem:[#allocation4 + $0x60] sm:$0xff] %vm1669, %v1665
        %1683 = vst.msk [vmem:[#allocation4 + $0x68] sm:$0xff] %vm1669, %v1666
        %1684 = vst.msk [vmem:[#allocation4 + $0x70] sm:$0xff] %vm1669, %v1667
        %1685 = vst.msk [vmem:[#allocation4 + $0x78] sm:$0xff] %vm1669, %v1668
        %v1686 = vld [vmem:[#allocation5] sm:$0xff]
        %v1687 = vld [vmem:[#allocation5 + $0x8] sm:$0xff]
        %v1688 = vld [vmem:[#allocation5 + $0x10] sm:$0xff]
        %v1689 = vld [vmem:[#allocation5 + $0x18] sm:$0xff]
        %v1690 = vld [vmem:[#allocation5 + $0x20] sm:$0xff]
        %v1691 = vld [vmem:[#allocation5 + $0x28] sm:$0xff]
        %v1692 = vld [vmem:[#allocation5 + $0x30] sm:$0xff]
        %v1693 = vld [vmem:[#allocation5 + $0x38] sm:$0xff]
        %v1694 = vld [vmem:[#allocation5 + $0x40] sm:$0xff]
        %v1695 = vld [vmem:[#allocation5 + $0x48] sm:$0xff]
        %v1696 = vld [vmem:[#allocation5 + $0x50] sm:$0xff]
        %v1697 = vld [vmem:[#allocation5 + $0x58] sm:$0xff]
        %v1698 = vld [vmem:[#allocation5 + $0x60] sm:$0xff]
        %v1699 = vld [vmem:[#allocation5 + $0x68] sm:$0xff]
        %v1700 = vld [vmem:[#allocation5 + $0x70] sm:$0xff]
        %v1701 = vld [vmem:[#allocation5 + $0x78] sm:$0xff]
        %1703 = vset.pattern.permute.xlu0 0
        %1704 = vperm.xlu0 %1703, %v1430
        %v1705 = vpop.permute.xlu0 %1704
        %1708 = vset.pattern.permute.xlu0 0
        %1709 = vperm.xlu0 %1708, %v1432
        %v1710 = vpop.permute.xlu0 %1709
        %1713 = vset.pattern.permute.xlu0 0
        %1714 = vperm.xlu0 %1713, %v1434
        %v1715 = vpop.permute.xlu0 %1714
        %1718 = vset.pattern.permute.xlu0 0
        %1719 = vperm.xlu0 %1718, %v1436
        %v1720 = vpop.permute.xlu0 %1719
        %1723 = vset.pattern.permute.xlu0 0
        %1724 = vperm.xlu0 %1723, %v1438
        %v1725 = vpop.permute.xlu0 %1724
        %1728 = vset.pattern.permute.xlu0 0
        %1729 = vperm.xlu0 %1728, %v1440
        %v1730 = vpop.permute.xlu0 %1729
        %1733 = vset.pattern.permute.xlu0 0
        %1734 = vperm.xlu0 %1733, %v1442
        %v1735 = vpop.permute.xlu0 %1734
        %1738 = vset.pattern.permute.xlu0 0
        %1739 = vperm.xlu0 %1738, %v1444
        %v1740 = vpop.permute.xlu0 %1739
        %1743 = vset.pattern.permute.xlu0 0
        %1744 = vperm.xlu0 %1743, %v1446
        %v1745 = vpop.permute.xlu0 %1744
        %1748 = vset.pattern.permute.xlu0 0
        %1749 = vperm.xlu0 %1748, %v1448
        %v1750 = vpop.permute.xlu0 %1749
        %1753 = vset.pattern.permute.xlu0 0
        %1754 = vperm.xlu0 %1753, %v1450
        %v1755 = vpop.permute.xlu0 %1754
        %1758 = vset.pattern.permute.xlu0 0
        %1759 = vperm.xlu0 %1758, %v1452
        %v1760 = vpop.permute.xlu0 %1759
        %1763 = vset.pattern.permute.xlu0 0
        %1764 = vperm.xlu0 %1763, %v1454
        %v1765 = vpop.permute.xlu0 %1764
        %1768 = vset.pattern.permute.xlu0 0
        %1769 = vperm.xlu0 %1768, %v1456
        %v1770 = vpop.permute.xlu0 %1769
        %1773 = vset.pattern.permute.xlu0 0
        %1774 = vperm.xlu0 %1773, %v1458
        %v1775 = vpop.permute.xlu0 %1774
        %1778 = vset.pattern.permute.xlu0 0
        %1779 = vperm.xlu0 %1778, %v1460
        %v1780 = vpop.permute.xlu0 %1779
        %v1782 = vmul.f32 %v1705, %v1686
        %v1783 = vmul.f32 %v1710, %v1687
        %v1784 = vmul.f32 %v1715, %v1688
        %v1785 = vmul.f32 %v1720, %v1689
        %v1786 = vmul.f32 %v1725, %v1690
        %v1787 = vmul.f32 %v1730, %v1691
        %v1788 = vmul.f32 %v1735, %v1692
        %v1789 = vmul.f32 %v1740, %v1693
        %v1790 = vmul.f32 %v1745, %v1694
        %v1791 = vmul.f32 %v1750, %v1695
        %v1792 = vmul.f32 %v1755, %v1696
        %v1793 = vmul.f32 %v1760, %v1697
        %v1794 = vmul.f32 %v1765, %v1698
        %v1795 = vmul.f32 %v1770, %v1699
        %v1796 = vmul.f32 %v1775, %v1700
        %v1797 = vmul.f32 %v1780, %v1701
        %v1798 = vpack.c.bf16 %v1560, %v1558
        %v1799 = vpack.c.bf16 %v1564, %v1562
        %v1800 = vpack.c.bf16 %v1568, %v1566
        %v1801 = vpack.c.bf16 %v1572, %v1570
        %v1802 = vpack.c.bf16 %v1576, %v1574
        %v1803 = vpack.c.bf16 %v1580, %v1578
        %v1804 = vpack.c.bf16 %v1584, %v1582
        %v1805 = vpack.c.bf16 %v1588, %v1586
        %1806 = vmatprep.subr.bf16.mxu0 0
        %1807 = vmatpush1.bf16.msra.mxu0 %v1187
        %1808 = vmatprep.subr.bf16.mxu0 0
        %1809 = vmatpush1.bf16.msra.mxu0 %v1186
        %1810 = vmatprep.subr.bf16.mxu0 0
        %1811 = vmatpush1.bf16.msra.mxu0 %v1185
        %1812 = vmatprep.subr.bf16.mxu0 0
        %1813 = vmatpush1.bf16.msra.mxu0 %v1184
        %1814 = vmatprep.subr.bf16.mxu0 0
        %1815 = vmatpush1.bf16.msra.mxu0 %v1183
        %1816 = vmatprep.subr.bf16.mxu0 0
        %1817 = vmatpush1.bf16.msra.mxu0 %v1182
        %1818 = vmatprep.subr.bf16.mxu0 0
        %1819 = vmatpush1.bf16.msra.mxu0 %v1181
        %1820 = vmatprep.subr.bf16.mxu0 0
        %1821 = vmatpush1.bf16.msra.mxu0 %v1180
        %1822 = vmatprep.subr.bf16.mxu0 0
        %1823 = vmatpush2.bf16.msra.mxu0 0
        %1824 = vmatprep.subr.bf16.mxu0 0
        %1825 = vmatpush2.bf16.msra.mxu0 0
        %1826 = vmatprep.subr.bf16.mxu0 0
        %1827 = vmatpush2.bf16.msra.mxu0 0
        %1828 = vmatprep.subr.bf16.mxu0 0
        %1829 = vmatpush2.bf16.msra.mxu0 0
        %1830 = vmatprep.subr.bf16.mxu0 0
        %1831 = vmatpush2.bf16.msra.mxu0 0
        %1832 = vmatprep.subr.bf16.mxu0 0
        %1833 = vmatpush2.bf16.msra.mxu0 0
        %1834 = vmatprep.subr.bf16.mxu0 0
        %1835 = vmatpush2.bf16.msra.mxu0 0
        %1836 = vmatprep.subr.bf16.mxu0 0
        %1837 = vmatpush2.bf16.msra.mxu0 0
        %1838 = vmatprep.mubr.bf16.mxu0 0
        %1839 = vmatmul.mubr.bf16.gmra.mxu0 %v1798
        %v1840 = vpop.f32.mrf.mxu0
        %v1841 = vadd.f32 0.0, %v1840
        %v1842 = vpop.f32.mrf.mxu0
        %v1843 = vpop.f32.mrf.mxu0
        %v1844 = vadd.f32 0.0, %v1843
        %v1845 = vpop.f32.mrf.mxu0
        %1846 = vmatprep.mubr.bf16.mxu0 0
        %1847 = vmatmul.mubr.bf16.gmra.mxu0 %v1799
        %v1848 = vpop.f32.mrf.mxu0
        %v1849 = vadd.f32 0.0, %v1848
        %v1850 = vpop.f32.mrf.mxu0
        %v1851 = vpop.f32.mrf.mxu0
        %v1852 = vadd.f32 0.0, %v1851
        %v1853 = vpop.f32.mrf.mxu0
        %1854 = vmatprep.mubr.bf16.mxu0 0
        %1855 = vmatmul.mubr.bf16.gmra.mxu0 %v1800
        %v1856 = vpop.f32.mrf.mxu0
        %v1857 = vadd.f32 0.0, %v1856
        %v1858 = vpop.f32.mrf.mxu0
        %v1859 = vpop.f32.mrf.mxu0
        %v1860 = vadd.f32 0.0, %v1859
        %v1861 = vpop.f32.mrf.mxu0
        %1862 = vmatprep.mubr.bf16.mxu0 0
        %1863 = vmatmul.mubr.bf16.gmra.mxu0 %v1801
        %v1864 = vpop.f32.mrf.mxu0
        %v1865 = vadd.f32 0.0, %v1864
        %v1866 = vpop.f32.mrf.mxu0
        %v1867 = vpop.f32.mrf.mxu0
        %v1868 = vadd.f32 0.0, %v1867
        %v1869 = vpop.f32.mrf.mxu0
        %1870 = vmatprep.mubr.bf16.mxu0 0
        %1871 = vmatmul.mubr.bf16.gmra.mxu0 %v1802
        %v1872 = vpop.f32.mrf.mxu0
        %v1873 = vadd.f32 0.0, %v1872
        %v1874 = vpop.f32.mrf.mxu0
        %v1875 = vpop.f32.mrf.mxu0
        %v1876 = vadd.f32 0.0, %v1875
        %v1877 = vpop.f32.mrf.mxu0
        %1878 = vmatprep.mubr.bf16.mxu0 0
        %1879 = vmatmul.mubr.bf16.gmra.mxu0 %v1803
        %v1880 = vpop.f32.mrf.mxu0
        %v1881 = vadd.f32 0.0, %v1880
        %v1882 = vpop.f32.mrf.mxu0
        %v1883 = vpop.f32.mrf.mxu0
        %v1884 = vadd.f32 0.0, %v1883
        %v1885 = vpop.f32.mrf.mxu0
        %1886 = vmatprep.mubr.bf16.mxu0 0
        %1887 = vmatmul.mubr.bf16.gmra.mxu0 %v1804
        %v1888 = vpop.f32.mrf.mxu0
        %v1889 = vadd.f32 0.0, %v1888
        %v1890 = vpop.f32.mrf.mxu0
        %v1891 = vpop.f32.mrf.mxu0
        %v1892 = vadd.f32 0.0, %v1891
        %v1893 = vpop.f32.mrf.mxu0
        %1894 = vmatprep.mubr.bf16.mxu0 0
        %1895 = vmatmul.mubr.bf16.gmra.mxu0 %v1805
        %v1896 = vpop.f32.mrf.mxu0
        %v1897 = vadd.f32 0.0, %v1896
        %v1898 = vpop.f32.mrf.mxu0
        %v1899 = vpop.f32.mrf.mxu0
        %v1900 = vadd.f32 0.0, %v1899
        %v1901 = vpop.f32.mrf.mxu0
        %1902 = vdwg.mxu0
        %v1903 = vadd.f32 %v1782, %v1841
        %v1904 = vadd.f32 %v1783, %v1844
        %v1905 = vadd.f32 %v1784, %v1849
        %v1906 = vadd.f32 %v1785, %v1852
        %v1907 = vadd.f32 %v1786, %v1857
        %v1908 = vadd.f32 %v1787, %v1860
        %v1909 = vadd.f32 %v1788, %v1865
        %v1910 = vadd.f32 %v1789, %v1868
        %v1911 = vadd.f32 %v1790, %v1873
        %v1912 = vadd.f32 %v1791, %v1876
        %v1913 = vadd.f32 %v1792, %v1881
        %v1914 = vadd.f32 %v1793, %v1884
        %v1915 = vadd.f32 %v1794, %v1889
        %v1916 = vadd.f32 %v1795, %v1892
        %v1917 = vadd.f32 %v1796, %v1897
        %v1918 = vadd.f32 %v1797, %v1900
        %1919 = vst [vmem:[#allocation5] sm:$0xff] %v1903
        %1920 = vst [vmem:[#allocation5 + $0x8] sm:$0xff] %v1904
        %1921 = vst [vmem:[#allocation5 + $0x10] sm:$0xff] %v1905
        %1922 = vst [vmem:[#allocation5 + $0x18] sm:$0xff] %v1906
        %1923 = vst [vmem:[#allocation5 + $0x20] sm:$0xff] %v1907
        %1924 = vst [vmem:[#allocation5 + $0x28] sm:$0xff] %v1908
        %1925 = vst [vmem:[#allocation5 + $0x30] sm:$0xff] %v1909
        %1926 = vst [vmem:[#allocation5 + $0x38] sm:$0xff] %v1910
        %1927 = vst [vmem:[#allocation5 + $0x40] sm:$0xff] %v1911
        %1928 = vst [vmem:[#allocation5 + $0x48] sm:$0xff] %v1912
        %1929 = vst [vmem:[#allocation5 + $0x50] sm:$0xff] %v1913
        %1930 = vst [vmem:[#allocation5 + $0x58] sm:$0xff] %v1914
        %1931 = vst [vmem:[#allocation5 + $0x60] sm:$0xff] %v1915
        %1932 = vst [vmem:[#allocation5 + $0x68] sm:$0xff] %v1916
        %1933 = vst [vmem:[#allocation5 + $0x70] sm:$0xff] %v1917
        %1934 = vst [vmem:[#allocation5 + $0x78] sm:$0xff] %v1918
        %1935 = vst.msk [vmem:[#allocation3] sm:$0xff] %vm1669, %v1397
        %1936 = vst.msk [vmem:[#allocation3 + $0x8] sm:$0xff] %vm1669, %v1398
        %1937 = vst.msk [vmem:[#allocation3 + $0x10] sm:$0xff] %vm1669, %v1399
        %1938 = vst.msk [vmem:[#allocation3 + $0x18] sm:$0xff] %vm1669, %v1400
        %1939 = vst.msk [vmem:[#allocation3 + $0x20] sm:$0xff] %vm1669, %v1401
        %1940 = vst.msk [vmem:[#allocation3 + $0x28] sm:$0xff] %vm1669, %v1402
        %1941 = vst.msk [vmem:[#allocation3 + $0x30] sm:$0xff] %vm1669, %v1403
        %1942 = vst.msk [vmem:[#allocation3 + $0x38] sm:$0xff] %vm1669, %v1404
        %1943 = vst.msk [vmem:[#allocation3 + $0x40] sm:$0xff] %vm1669, %v1405
        %1944 = vst.msk [vmem:[#allocation3 + $0x48] sm:$0xff] %vm1669, %v1406
        %1945 = vst.msk [vmem:[#allocation3 + $0x50] sm:$0xff] %vm1669, %v1407
        %1946 = vst.msk [vmem:[#allocation3 + $0x58] sm:$0xff] %vm1669, %v1408
        %1947 = vst.msk [vmem:[#allocation3 + $0x60] sm:$0xff] %vm1669, %v1409
        %1948 = vst.msk [vmem:[#allocation3 + $0x68] sm:$0xff] %vm1669, %v1410
        %1949 = vst.msk [vmem:[#allocation3 + $0x70] sm:$0xff] %vm1669, %v1411
        %1950 = vst.msk [vmem:[#allocation3 + $0x78] sm:$0xff] %vm1669, %v1412
        %p1951 = scmp.eq.s32.totalorder %s36, 1
        // Predicated region
        $region77: #{tpu_custom_call.1} parent=47 // pred_check
          %p1952 = pneg %p1951
        $region78: #{tpu_custom_call.1} parent=47 // pred_check_branch
          %1954 = sbr.rel (%p1952) target = $region80
        $region79: #{tpu_custom_call.1} parent=47 // pred_region
          %v1955 = vld [vmem:[#allocation5] sm:$0xff]
          %v1956 = vld [vmem:[#allocation5 + $0x8] sm:$0xff]
          %v1957 = vld [vmem:[#allocation5 + $0x10] sm:$0xff]
          %v1958 = vld [vmem:[#allocation5 + $0x18] sm:$0xff]
          %v1959 = vld [vmem:[#allocation5 + $0x20] sm:$0xff]
          %v1960 = vld [vmem:[#allocation5 + $0x28] sm:$0xff]
          %v1961 = vld [vmem:[#allocation5 + $0x30] sm:$0xff]
          %v1962 = vld [vmem:[#allocation5 + $0x38] sm:$0xff]
          %v1963 = vld [vmem:[#allocation5 + $0x40] sm:$0xff]
          %v1964 = vld [vmem:[#allocation5 + $0x48] sm:$0xff]
          %v1965 = vld [vmem:[#allocation5 + $0x50] sm:$0xff]
          %v1966 = vld [vmem:[#allocation5 + $0x58] sm:$0xff]
          %v1967 = vld [vmem:[#allocation5 + $0x60] sm:$0xff]
          %v1968 = vld [vmem:[#allocation5 + $0x68] sm:$0xff]
          %v1969 = vld [vmem:[#allocation5 + $0x70] sm:$0xff]
          %v1970 = vld [vmem:[#allocation5 + $0x78] sm:$0xff]
          %v1971 = vld [vmem:[#allocation4] sm:$0xff]
          %v1972 = vld [vmem:[#allocation4 + $0x8] sm:$0xff]
          %v1973 = vld [vmem:[#allocation4 + $0x10] sm:$0xff]
          %v1974 = vld [vmem:[#allocation4 + $0x18] sm:$0xff]
          %v1975 = vld [vmem:[#allocation4 + $0x20] sm:$0xff]
          %v1976 = vld [vmem:[#allocation4 + $0x28] sm:$0xff]
          %v1977 = vld [vmem:[#allocation4 + $0x30] sm:$0xff]
          %v1978 = vld [vmem:[#allocation4 + $0x38] sm:$0xff]
          %v1979 = vld [vmem:[#allocation4 + $0x40] sm:$0xff]
          %v1980 = vld [vmem:[#allocation4 + $0x48] sm:$0xff]
          %v1981 = vld [vmem:[#allocation4 + $0x50] sm:$0xff]
          %v1982 = vld [vmem:[#allocation4 + $0x58] sm:$0xff]
          %v1983 = vld [vmem:[#allocation4 + $0x60] sm:$0xff]
          %v1984 = vld [vmem:[#allocation4 + $0x68] sm:$0xff]
          %v1985 = vld [vmem:[#allocation4 + $0x70] sm:$0xff]
          %v1986 = vld [vmem:[#allocation4 + $0x78] sm:$0xff]
          %v1987 = vrcp.pop %v1971
          %v1988 = vrcp.pop %v1972
          %v1989 = vrcp.pop %v1973
          %v1990 = vrcp.pop %v1974
          %v1991 = vrcp.pop %v1975
          %v1992 = vrcp.pop %v1976
          %v1993 = vrcp.pop %v1977
          %v1994 = vrcp.pop %v1978
          %v1995 = vrcp.pop %v1979
          %v1996 = vrcp.pop %v1980
          %v1997 = vrcp.pop %v1981
          %v1998 = vrcp.pop %v1982
          %v1999 = vrcp.pop %v1983
          %v2000 = vrcp.pop %v1984
          %v2001 = vrcp.pop %v1985
          %v2002 = vrcp.pop %v1986
          %2004 = vset.pattern.permute.xlu0 0
          %2005 = vperm.xlu0 %2004, %v1987
          %v2006 = vpop.permute.xlu0 %2005
          %2009 = vset.pattern.permute.xlu0 0
          %2010 = vperm.xlu0 %2009, %v1988
          %v2011 = vpop.permute.xlu0 %2010
          %2014 = vset.pattern.permute.xlu0 0
          %2015 = vperm.xlu0 %2014, %v1989
          %v2016 = vpop.permute.xlu0 %2015
          %2019 = vset.pattern.permute.xlu0 0
          %2020 = vperm.xlu0 %2019, %v1990
          %v2021 = vpop.permute.xlu0 %2020
          %2024 = vset.pattern.permute.xlu0 0
          %2025 = vperm.xlu0 %2024, %v1991
          %v2026 = vpop.permute.xlu0 %2025
          %2029 = vset.pattern.permute.xlu0 0
          %2030 = vperm.xlu0 %2029, %v1992
          %v2031 = vpop.permute.xlu0 %2030
          %2034 = vset.pattern.permute.xlu0 0
          %2035 = vperm.xlu0 %2034, %v1993
          %v2036 = vpop.permute.xlu0 %2035
          %2039 = vset.pattern.permute.xlu0 0
          %2040 = vperm.xlu0 %2039, %v1994
          %v2041 = vpop.permute.xlu0 %2040
          %2044 = vset.pattern.permute.xlu0 0
          %2045 = vperm.xlu0 %2044, %v1995
          %v2046 = vpop.permute.xlu0 %2045
          %2049 = vset.pattern.permute.xlu0 0
          %2050 = vperm.xlu0 %2049, %v1996
          %v2051 = vpop.permute.xlu0 %2050
          %2054 = vset.pattern.permute.xlu0 0
          %2055 = vperm.xlu0 %2054, %v1997
          %v2056 = vpop.permute.xlu0 %2055
          %2059 = vset.pattern.permute.xlu0 0
          %2060 = vperm.xlu0 %2059, %v1998
          %v2061 = vpop.permute.xlu0 %2060
          %2064 = vset.pattern.permute.xlu0 0
          %2065 = vperm.xlu0 %2064, %v1999
          %v2066 = vpop.permute.xlu0 %2065
          %2069 = vset.pattern.permute.xlu0 0
          %2070 = vperm.xlu0 %2069, %v2000
          %v2071 = vpop.permute.xlu0 %2070
          %2074 = vset.pattern.permute.xlu0 0
          %2075 = vperm.xlu0 %2074, %v2001
          %v2076 = vpop.permute.xlu0 %2075
          %2079 = vset.pattern.permute.xlu0 0
          %2080 = vperm.xlu0 %2079, %v2002
          %v2081 = vpop.permute.xlu0 %2080
          %v2083 = vmul.f32 %v1955, %v2006
          %v2084 = vmul.f32 %v1956, %v2011
          %v2085 = vmul.f32 %v1957, %v2016
          %v2086 = vmul.f32 %v1958, %v2021
          %v2087 = vmul.f32 %v1959, %v2026
          %v2088 = vmul.f32 %v1960, %v2031
          %v2089 = vmul.f32 %v1961, %v2036
          %v2090 = vmul.f32 %v1962, %v2041
          %v2091 = vmul.f32 %v1963, %v2046
          %v2092 = vmul.f32 %v1964, %v2051
          %v2093 = vmul.f32 %v1965, %v2056
          %v2094 = vmul.f32 %v1966, %v2061
          %v2095 = vmul.f32 %v1967, %v2066
          %v2096 = vmul.f32 %v1968, %v2071
          %v2097 = vmul.f32 %v1969, %v2076
          %v2098 = vmul.f32 %v1970, %v2081
          %v2099 = vpack.c.bf16 %v2084, %v2083
          %v2100 = vpack.c.bf16 %v2086, %v2085
          %v2101 = vpack.c.bf16 %v2088, %v2087
          %v2102 = vpack.c.bf16 %v2090, %v2089
          %v2103 = vpack.c.bf16 %v2092, %v2091
          %v2104 = vpack.c.bf16 %v2094, %v2093
          %v2105 = vpack.c.bf16 %v2096, %v2095
          %v2106 = vpack.c.bf16 %v2098, %v2097
          %v2107 = vld [vmem:[#allocation15] sm:$0xf]
          %v2108 = vld [vmem:[#allocation15 + $0x4] sm:$0xf]
          %v2109 = vld [vmem:[#allocation15 + $0x8] sm:$0xf]
          %v2110 = vld [vmem:[#allocation15 + $0xc] sm:$0xf]
          %v2111 = vld [vmem:[#allocation15 + $0x10] sm:$0xf]
          %v2112 = vld [vmem:[#allocation15 + $0x14] sm:$0xf]
          %v2113 = vld [vmem:[#allocation15 + $0x18] sm:$0xf]
          %v2114 = vld [vmem:[#allocation15 + $0x1c] sm:$0xf]
          %v2115 = vld [vmem:[#allocation15 + $0x20] sm:$0xf]
          %v2116 = vld [vmem:[#allocation15 + $0x24] sm:$0xf]
          %v2117 = vld [vmem:[#allocation15 + $0x28] sm:$0xf]
          %v2118 = vld [vmem:[#allocation15 + $0x2c] sm:$0xf]
          %v2119 = vld [vmem:[#allocation15 + $0x30] sm:$0xf]
          %v2120 = vld [vmem:[#allocation15 + $0x34] sm:$0xf]
          %v2121 = vld [vmem:[#allocation15 + $0x38] sm:$0xf]
          %v2122 = vld [vmem:[#allocation15 + $0x3c] sm:$0xf]
          %v2123 = vld [vmem:[%s6] sm:$0x1]
          %v2125 = vlaneseq
          %v2126 = vshrl.u32 %v2125, 7
          %v2127 = vsub.s32 0, %v2126
          %v2128 = vrot.slane %v2123, %v2127
          %v2146 = vunpack.c.l.b16 %v2107
          %v2147 = vunpack.c.l.b16 %v2108
          %v2148 = vunpack.c.l.b16 %v2109
          %v2149 = vunpack.c.l.b16 %v2110
          %v2150 = vunpack.c.l.b16 %v2111
          %v2151 = vunpack.c.l.b16 %v2112
          %v2152 = vunpack.c.l.b16 %v2113
          %v2153 = vunpack.c.l.b16 %v2114
          %v2154 = vunpack.c.l.b16 %v2115
          %v2155 = vunpack.c.l.b16 %v2116
          %v2156 = vunpack.c.l.b16 %v2117
          %v2157 = vunpack.c.l.b16 %v2118
          %v2158 = vunpack.c.l.b16 %v2119
          %v2159 = vunpack.c.l.b16 %v2120
          %v2160 = vunpack.c.l.b16 %v2121
          %v2161 = vunpack.c.l.b16 %v2122
          %v2162 = vpack.c.b16 %v2147, %v2146
          %v2163 = vpack.c.b16 %v2149, %v2148
          %v2164 = vpack.c.b16 %v2151, %v2150
          %v2165 = vpack.c.b16 %v2153, %v2152
          %v2166 = vpack.c.b16 %v2155, %v2154
          %v2167 = vpack.c.b16 %v2157, %v2156
          %v2168 = vpack.c.b16 %v2159, %v2158
          %v2169 = vpack.c.b16 %v2161, %v2160
          %2178 = vmatprep.subr.bf16.mxu0 0
          %2179 = vmatpush1.bf16.msra.mxu0 %v2169
          %2180 = vmatprep.subr.bf16.mxu0 0
          %2181 = vmatpush1.bf16.msra.mxu0 %v2168
          %2182 = vmatprep.subr.bf16.mxu0 0
          %2183 = vmatpush1.bf16.msra.mxu0 %v2167
          %2184 = vmatprep.subr.bf16.mxu0 0
          %2185 = vmatpush1.bf16.msra.mxu0 %v2166
          %2186 = vmatprep.subr.bf16.mxu0 0
          %2187 = vmatpush1.bf16.msra.mxu0 %v2165
          %2188 = vmatprep.subr.bf16.mxu0 0
          %2189 = vmatpush1.bf16.msra.mxu0 %v2164
          %2190 = vmatprep.subr.bf16.mxu0 0
          %2191 = vmatpush1.bf16.msra.mxu0 %v2163
          %2192 = vmatprep.subr.bf16.mxu0 0
          %2193 = vmatpush1.bf16.msra.mxu0 %v2162
          %2194 = vmatprep.subr.bf16.mxu0 0
          %2195 = vmatpush2.bf16.msra.mxu0 0
          %2196 = vmatprep.subr.bf16.mxu0 0
          %2197 = vmatpush2.bf16.msra.mxu0 0
          %2198 = vmatprep.subr.bf16.mxu0 0
          %2199 = vmatpush2.bf16.msra.mxu0 0
          %2200 = vmatprep.subr.bf16.mxu0 0
          %2201 = vmatpush2.bf16.msra.mxu0 0
          %2202 = vmatprep.subr.bf16.mxu0 0
          %2203 = vmatpush2.bf16.msra.mxu0 0
          %2204 = vmatprep.subr.bf16.mxu0 0
          %2205 = vmatpush2.bf16.msra.mxu0 0
          %2206 = vmatprep.subr.bf16.mxu0 0
          %2207 = vmatpush2.bf16.msra.mxu0 0
          %2208 = vmatprep.subr.bf16.mxu0 0
          %2209 = vmatpush2.bf16.msra.mxu0 0
          %2210 = vmatprep.mubr.bf16.mxu0 0
          %2211 = vmatmul.mubr.bf16.gmra.mxu0 %v2099
          %v2212 = vpop.f32.mrf.mxu0
          %v2213 = vadd.f32 %v2128, %v2212
          %v2214 = vpop.f32.mrf.mxu0
          %v2215 = vpop.f32.mrf.mxu0
          %v2216 = vadd.f32 %v2128, %v2215
          %v2217 = vpop.f32.mrf.mxu0
          %2218 = vmatprep.mubr.bf16.mxu0 0
          %2219 = vmatmul.mubr.bf16.gmra.mxu0 %v2100
          %v2220 = vpop.f32.mrf.mxu0
          %v2221 = vadd.f32 %v2128, %v2220
          %v2222 = vpop.f32.mrf.mxu0
          %v2223 = vpop.f32.mrf.mxu0
          %v2224 = vadd.f32 %v2128, %v2223
          %v2225 = vpop.f32.mrf.mxu0
          %2226 = vmatprep.mubr.bf16.mxu0 0
          %2227 = vmatmul.mubr.bf16.gmra.mxu0 %v2101
          %v2228 = vpop.f32.mrf.mxu0
          %v2229 = vadd.f32 %v2128, %v2228
          %v2230 = vpop.f32.mrf.mxu0
          %v2231 = vpop.f32.mrf.mxu0
          %v2232 = vadd.f32 %v2128, %v2231
          %v2233 = vpop.f32.mrf.mxu0
          %2234 = vmatprep.mubr.bf16.mxu0 0
          %2235 = vmatmul.mubr.bf16.gmra.mxu0 %v2102
          %v2236 = vpop.f32.mrf.mxu0
          %v2237 = vadd.f32 %v2128, %v2236
          %v2238 = vpop.f32.mrf.mxu0
          %v2239 = vpop.f32.mrf.mxu0
          %v2240 = vadd.f32 %v2128, %v2239
          %v2241 = vpop.f32.mrf.mxu0
          %2242 = vmatprep.mubr.bf16.mxu0 0
          %2243 = vmatmul.mubr.bf16.gmra.mxu0 %v2103
          %v2244 = vpop.f32.mrf.mxu0
          %v2245 = vadd.f32 %v2128, %v2244
          %v2246 = vpop.f32.mrf.mxu0
          %v2247 = vpop.f32.mrf.mxu0
          %v2248 = vadd.f32 %v2128, %v2247
          %v2249 = vpop.f32.mrf.mxu0
          %2250 = vmatprep.mubr.bf16.mxu0 0
          %2251 = vmatmul.mubr.bf16.gmra.mxu0 %v2104
          %v2252 = vpop.f32.mrf.mxu0
          %v2253 = vadd.f32 %v2128, %v2252
          %v2254 = vpop.f32.mrf.mxu0
          %v2255 = vpop.f32.mrf.mxu0
          %v2256 = vadd.f32 %v2128, %v2255
          %v2257 = vpop.f32.mrf.mxu0
          %2258 = vmatprep.mubr.bf16.mxu0 0
          %2259 = vmatmul.mubr.bf16.gmra.mxu0 %v2105
          %v2260 = vpop.f32.mrf.mxu0
          %v2261 = vadd.f32 %v2128, %v2260
          %v2262 = vpop.f32.mrf.mxu0
          %v2263 = vpop.f32.mrf.mxu0
          %v2264 = vadd.f32 %v2128, %v2263
          %v2265 = vpop.f32.mrf.mxu0
          %2266 = vmatprep.mubr.bf16.mxu0 0
          %2267 = vmatmul.mubr.bf16.gmra.mxu0 %v2106
          %v2268 = vpop.f32.mrf.mxu0
          %v2269 = vadd.f32 %v2128, %v2268
          %v2270 = vpop.f32.mrf.mxu0
          %v2271 = vpop.f32.mrf.mxu0
          %v2272 = vadd.f32 %v2128, %v2271
          %v2273 = vpop.f32.mrf.mxu0
          %2274 = vdwg.mxu0
          %2275 = vst [vmem:[%s423] sm:$0xff] %v2213
          %2276 = vst [vmem:[%s423 + $0x8] sm:$0xff] %v2216
          %2277 = vst [vmem:[%s423 + $0x10] sm:$0xff] %v2221
          %2278 = vst [vmem:[%s423 + $0x18] sm:$0xff] %v2224
          %2279 = vst [vmem:[%s423 + $0x20] sm:$0xff] %v2229
          %2280 = vst [vmem:[%s423 + $0x28] sm:$0xff] %v2232
          %2281 = vst [vmem:[%s423 + $0x30] sm:$0xff] %v2237
          %2282 = vst [vmem:[%s423 + $0x38] sm:$0xff] %v2240
          %2283 = vst [vmem:[%s423 + $0x40] sm:$0xff] %v2245
          %2284 = vst [vmem:[%s423 + $0x48] sm:$0xff] %v2248
          %2285 = vst [vmem:[%s423 + $0x50] sm:$0xff] %v2253
          %2286 = vst [vmem:[%s423 + $0x58] sm:$0xff] %v2256
          %2287 = vst [vmem:[%s423 + $0x60] sm:$0xff] %v2261
          %2288 = vst [vmem:[%s423 + $0x68] sm:$0xff] %v2264
          %2289 = vst [vmem:[%s423 + $0x70] sm:$0xff] %v2269
          %2290 = vst [vmem:[%s423 + $0x78] sm:$0xff] %v2272
        $region80: #{tpu_custom_call.1} parent=47 // pred_fallthru
          _
        %s2291 = sand.u32 %s219, 1
        %s2292 = scalar_lea.sflag [#allocation8], %s2291
        %s2293 = sand.u32 %s219, 1
        %s2294 = smul.addr %s2293, 128
        %s2295 = scalar_lea.vmem [#allocation17], %s2294
        // Predicated region
        $region81: #{tpu_custom_call.1} parent=47 // pred_check
          %p2296 = pneg %p229
        $region82: #{tpu_custom_call.1} parent=47 // pred_check_branch
          %2298 = sbr.rel (%p2296) target = $region84
        $region83: #{tpu_custom_call.1} parent=47 // pred_region
          %s2299 = smul.u32 16, %s35
          %s2301 = ssub.s32 2048, 2048
          %2302 = vsyncadd %s2292, %s2301
          %s2303 = smul.addr %s34, 32
          %s2304 = sadd.s32 %s2299, %s2303
          %s2305 = smul.addr %s2304, 128
          %s2306 = scalar_lea.hbm %s7, %s2305
          %s2307 = sshll.u32 %s2295, 4
          %s2308 = int_to_ptr.vmem [resolvable:$true] %s2307
          %2313 = dma.vmem_to_hbm [thread:$0]  %s2308, 2048, %s2306, %s2292, 128, 128, 8
        $region84: #{tpu_custom_call.1} parent=47 // pred_fallthru
          _
      $region48: #{tpu_custom_call.1} parent=5 // pred_fallthru
        _
      %p2314 = scmp.le.s32.totalorder 2, %s24
      // Predicated region
      $region85: #{tpu_custom_call.1} parent=5 // pred_check
        %p2315 = pneg %p2314
      $region86: #{tpu_custom_call.1} parent=5 // pred_check_branch
        %2317 = sbr.rel (%p2315) target = $region88
      $region87: #{tpu_custom_call.1} parent=5 // pred_region
        %s2318 = ssub.s32 %s24, 2
        // Predicated region
        $region89: #{tpu_custom_call.1} parent=87 // pred_check
          %p2319 = pneg %p235
        $region90: #{tpu_custom_call.1} parent=87 // pred_check_branch
          %2321 = sbr.rel (%p2319) target = $region92
        $region91: #{tpu_custom_call.1} parent=87 // pred_region
          %s2322 = sand.u32 %s220, 1
          %s2323 = scalar_lea.sflag [#allocation8], %s2322
          %s2324 = sand.u32 %s220, 1
          %s2325 = smul.addr %s2324, 128
          %s2326 = scalar_lea.vmem [#allocation17], %s2325
          %2327 = dma.done %s2323, 2048
        $region92: #{tpu_custom_call.1} parent=87 // pred_fallthru
          _
      $region88: #{tpu_custom_call.1} parent=5 // pred_fallthru
        _
    $region6: #{tpu_custom_call.1} parent=1 // loop_footer
      %s28 = sadd.s32 1, %s24
    $region7: #{tpu_custom_call.1} parent=1 // loop_footer_branch
      %23 = sbr.rel target = $region3
    $region8: #{tpu_custom_call.1} parent=1 // loop_exit
      _
    %2328 = vsyncpa [#allocation7], 1
    %s2329 = scalar_lea.sflag [#allocation7], 1
    %2330 = vsyncpa %s2329, 1
    %2331 = vsyncpa [#allocation10], 1
    %s2332 = scalar_lea.sflag [#allocation10], 1
    %2333 = vsyncpa %s2332, 1
    %2334 = vsyncpa [#allocation13], 1
    %2335 = vsyncpa [#allocation16], 1
    %2336 = vsyncpa [#allocation8], 1
    %s2337 = scalar_lea.sflag [#allocation8], 1
    %2338 = vsyncpa %s2337, 1

</llo_original>
